<compile_context>
chip_gen: v5e
topology: v5e:2x2
jax: 0.10.0
libtpu: 0.0.40
codegen_flags: <defaults>
</compile_context>

<pallas_src>
import jax
import jax.numpy as jnp
from jax.experimental import pallas as pl
from jax.experimental.pallas import tpu as pltpu

N_INPUT = 784
N2 = 392
N_BOTTLENECK = 8
N_OUTPUT = 784

TB_TARGET = 1024  # batch tile for large batches (multiple of 256 -> fills MXU)

# FLOPs per batch row (2 * sum of matmul MACs) and weight bytes (bf16 + f32 biases).
_FLOPS_PER_ROW = 2 * (N_INPUT * N2 + N2 * N_BOTTLENECK + N_BOTTLENECK * N2 + N2 * N_OUTPUT)
_WEIGHT_BYTES = 2 * (N_INPUT * N2 + N2 * N_BOTTLENECK + N_BOTTLENECK * N2 + N2 * N_OUTPUT) \
    + 4 * (N2 + N_BOTTLENECK + N2 + N_OUTPUT)


def mlp4_kernel(x_ref, w1_ref, b1_ref, w2_ref, b2_ref,
                w3_ref, b3_ref, w4_ref, b4_ref, o_ref):
    wdt = w1_ref.dtype  # bf16 compute dtype for MXU operands

    # In-kernel cast of the streamed f32 input tile to bf16 (saves an XLA op
    # and an HBM round-trip of the input).
    x = x_ref[...].astype(wdt)

    # fc1 + relu  (bf16 x bf16 -> f32 accumulate, f32 bias)
    h = jnp.dot(x, w1_ref[...], preferred_element_type=jnp.float32) + b1_ref[...]
    h = jnp.maximum(h, 0.0)
    # fc2 + relu  (bottleneck, tiny)
    h = jnp.dot(h.astype(wdt), w2_ref[...],
                preferred_element_type=jnp.float32) + b2_ref[...]
    h = jnp.maximum(h, 0.0)
    # fc3 + relu
    h = jnp.dot(h.astype(wdt), w3_ref[...],
                preferred_element_type=jnp.float32) + b3_ref[...]
    h = jnp.maximum(h, 0.0)
    # fc4 + sigmoid (sigmoid -> EUP logistic, free VLIW slot)
    h = jnp.dot(h.astype(wdt), w4_ref[...],
                preferred_element_type=jnp.float32) + b4_ref[...]
    o_ref[...] = jax.nn.sigmoid(h).astype(o_ref.dtype)


def _round_up(a, m):
    return ((a + m - 1) // m) * m


def prepare_params(params_f32):
    """One-time cast: bf16 weights (in, out) + f32 (1, out) biases.

    Do this once at model-load time so no per-forward cast ops are emitted."""
    w1, b1, w2, b2, w3, b3, w4, b4 = params_f32
    return (w1.astype(jnp.bfloat16), b1.astype(jnp.float32),
            w2.astype(jnp.bfloat16), b2.astype(jnp.float32),
            w3.astype(jnp.bfloat16), b3.astype(jnp.float32),
            w4.astype(jnp.bfloat16), b4.astype(jnp.float32))


def autoencoder_mlp4_forward(x, prepared_params, tb=TB_TARGET, out_dtype=jnp.float32):
    """x: (B, 784) float32 -> (B, 784) out_dtype (default f32, matching PyTorch)."""
    w1b, b1f, w2b, b2f, w3b, b3f, w4b, b4f = prepared_params
    B = x.shape[0]

    # Sublane-pad the batch, then pick a tile: big (TB_TARGET) for throughput,
    # but capped at ~half the batch so the grid has >=2 steps whenever B allows
    # (lets v7x shard the batch axis across both TensorCores and lets the
    # pipeline overlap DMA with compute).
    B8 = _round_up(B, 8)
    tb_cap = max(8, _round_up(-(-B8 // 2), 8))   # ceil(B8/2) rounded up to 8
    TB = min(tb, tb_cap)
    Bp = _round_up(B8, TB)
    if Bp != B:
        x = jnp.pad(x, ((0, Bp - B), (0, 0)))

    def resident(shape):
        # Whole array as one block, same block every grid step -> stays in VMEM.
        return pl.BlockSpec(shape, lambda i: (0, 0))

    out_bytes = jnp.dtype(out_dtype).itemsize
    cost = pl.CostEstimate(
        flops=Bp * _FLOPS_PER_ROW,
        transcendentals=Bp * N_OUTPUT,
        bytes_accessed=Bp * N_INPUT * 4 + Bp * N_OUTPUT * out_bytes + _WEIGHT_BYTES,
    )

    out = pl.pallas_call(
        mlp4_kernel,
        out_shape=jax.ShapeDtypeStruct((Bp, N_OUTPUT), out_dtype),
        grid=(Bp // TB,),
        in_specs=[
            pl.BlockSpec((TB, N_INPUT), lambda i: (i, 0)),   # x: streamed f32 tile
            resident(w1b.shape), resident(b1f.shape),
            resident(w2b.shape), resident(b2f.shape),
            resident(w3b.shape), resident(b3f.shape),
            resident(w4b.shape), resident(b4f.shape),
        ],
        out_specs=pl.BlockSpec((TB, N_OUTPUT), lambda i: (i, 0)),
        compiler_params=pltpu.CompilerParams(
            dimension_semantics=("parallel",),
            vmem_limit_bytes=32 * 1024 * 1024,
        ),
        cost_estimate=cost,
    )(x, w1b, b1f, w2b, b2f, w3b, b3f, w4b, b4f)

    return out[:B]


def init_params(key):
    """Deterministic init matching PyTorch nn.Linear default:
    U(-1/sqrt(fan_in), 1/sqrt(fan_in)) for both weight and bias.
    Weights are returned pre-transposed to (in, out), f32."""
    dims = [(N_INPUT, N2), (N2, N_BOTTLENECK), (N_BOTTLENECK, N2), (N2, N_OUTPUT)]
    params = []
    for (fan_in, fan_out) in dims:
        key, kw, kb = jax.random.split(key, 3)
        bound = 1.0 / jnp.sqrt(float(fan_in))
        w = jax.random.uniform(kw, (fan_in, fan_out), jnp.float32, -bound, bound)
        b = jax.random.uniform(kb, (1, fan_out), jnp.float32, -bound, bound)
        params += [w, b]
    return tuple(params)


def reference_forward(x, params_f32):
    """Pure-JAX reference with the same bf16-operand / f32-accumulate numerics.
    (The bf16-vs-pure-f32 gap ~1e-3 rel. error is an accepted deviation from
    the f32 PyTorch forward.)"""
    w1, b1, w2, b2, w3, b3, w4, b4 = params_f32
    bf = jnp.bfloat16
    h = x.astype(bf)
    h = jnp.maximum(jnp.dot(h, w1.astype(bf), preferred_element_type=jnp.float32) + b1, 0.0)
    h = jnp.maximum(jnp.dot(h.astype(bf), w2.astype(bf), preferred_element_type=jnp.float32) + b2, 0.0)
    h = jnp.maximum(jnp.dot(h.astype(bf), w3.astype(bf), preferred_element_type=jnp.float32) + b3, 0.0)
    return jax.nn.sigmoid(jnp.dot(h.astype(bf), w4.astype(bf), preferred_element_type=jnp.float32) + b4)


if __name__ == "__main__":
    key = jax.random.PRNGKey(0)
    key, kx = jax.random.split(key)
    B = 4  # small demo batch (MNIST-like pixels in [0,1))
    x = jax.random.uniform(kx, (B, N_INPUT), jnp.float32)

    params_f32 = init_params(key)
    prepared = prepare_params(params_f32)   # one-time bf16/f32 layout

    out = autoencoder_mlp4_forward(x, prepared)
    out = jax.block_until_ready(out)

    ref = reference_forward(x, params_f32)
    assert out.shape == (B, N_OUTPUT) and out.dtype == jnp.float32
    assert bool(jnp.all((out >= 0.0) & (out <= 1.0)))
    assert jnp.allclose(out, ref, atol=1e-2, rtol=1e-2)

    # Exercise a multi-tile grid path as well (grid >= 2 steps).
    B2 = 48
    key, kx2 = jax.random.split(key)
    x2 = jax.random.uniform(kx2, (B2, N_INPUT), jnp.float32)
    out2 = jax.block_until_ready(autoencoder_mlp4_forward(x2, prepared))
    ref2 = reference_forward(x2, params_f32)
    assert out2.shape == (B2, N_OUTPUT)
    assert jnp.allclose(out2, ref2, atol=1e-2, rtol=1e-2)

    print("KERNEL_OK")
</pallas_src>

<mosaic_0001>
module attributes {stable_mosaic.version = 11 : i64} {
  func.func @mlp4_kernel(%arg0: i32, %arg1: memref<8x784xf32, #tpu.memory_space<vmem>>, %arg2: memref<784x392xbf16, #tpu.memory_space<vmem>>, %arg3: memref<1x392xf32, #tpu.memory_space<vmem>>, %arg4: memref<392x8xbf16, #tpu.memory_space<vmem>>, %arg5: memref<1x8xf32, #tpu.memory_space<vmem>>, %arg6: memref<8x392xbf16, #tpu.memory_space<vmem>>, %arg7: memref<1x392xf32, #tpu.memory_space<vmem>>, %arg8: memref<392x784xbf16, #tpu.memory_space<vmem>>, %arg9: memref<1x784xf32, #tpu.memory_space<vmem>>, %arg10: memref<8x784xf32, #tpu.memory_space<vmem>>) attributes {dimension_semantics = [#tpu.dimension_semantics<parallel>], iteration_bounds = array<i64: 1>, scalar_prefetch = 0 : i64, scratch_operands = 0 : i64, tpu.core_type = #tpu.core_type<tc>, window_params = [{transform_indices = @transform_0, window_bounds = array<i64: 8, 784>}, {pipeline_mode = #tpu.pipeline_mode<synchronous>, transform_indices = @transform_1, window_bounds = array<i64: 784, 392>}, {pipeline_mode = #tpu.pipeline_mode<synchronous>, transform_indices = @transform_2, window_bounds = array<i64: 1, 392>}, {pipeline_mode = #tpu.pipeline_mode<synchronous>, transform_indices = @transform_3, window_bounds = array<i64: 392, 8>}, {pipeline_mode = #tpu.pipeline_mode<synchronous>, transform_indices = @transform_4, window_bounds = array<i64: 1, 8>}, {pipeline_mode = #tpu.pipeline_mode<synchronous>, transform_indices = @transform_5, window_bounds = array<i64: 8, 392>}, {pipeline_mode = #tpu.pipeline_mode<synchronous>, transform_indices = @transform_6, window_bounds = array<i64: 1, 392>}, {pipeline_mode = #tpu.pipeline_mode<synchronous>, transform_indices = @transform_7, window_bounds = array<i64: 392, 784>}, {pipeline_mode = #tpu.pipeline_mode<synchronous>, transform_indices = @transform_8, window_bounds = array<i64: 1, 784>}, {transform_indices = @transform_9, window_bounds = array<i64: 8, 784>}]} {
    %c0 = arith.constant 0 : index
    %c0_0 = arith.constant 0 : index
    %0 = vector.load %arg1[%c0, %c0_0] : memref<8x784xf32, #tpu.memory_space<vmem>>, vector<8x784xf32>
    %1 = arith.truncf %0 : vector<8x784xf32> to vector<8x784xbf16>
    %c0_1 = arith.constant 0 : index
    %c0_2 = arith.constant 0 : index
    %2 = vector.load %arg2[%c0_1, %c0_2] : memref<784x392xbf16, #tpu.memory_space<vmem>>, vector<784x392xbf16>
    %cst = arith.constant dense<0.000000e+00> : vector<8x392xf32>
    %3 = tpu.matmul %1, %2, %cst {dimension_numbers = #tpu.dot_dimension_numbers<[1], [0], [0], [1], [0, 0, 1, 1], [], []>} : vector<8x784xbf16>, vector<784x392xbf16>, vector<8x392xf32> -> vector<8x392xf32>
    %c0_3 = arith.constant 0 : index
    %c0_4 = arith.constant 0 : index
    %4 = vector.load %arg3[%c0_3, %c0_4] : memref<1x392xf32, #tpu.memory_space<vmem>>, vector<1x392xf32>
    %5 = vector.broadcast %4 : vector<1x392xf32> to vector<8x392xf32>
    %6 = arith.addf %3, %5 : vector<8x392xf32>
    %cst_5 = arith.constant 0.000000e+00 : f32
    %7 = vector.broadcast %cst_5 : f32 to vector<8x392xf32>
    %8 = arith.maximumf %6, %7 : vector<8x392xf32>
    %9 = arith.truncf %8 : vector<8x392xf32> to vector<8x392xbf16>
    %c0_6 = arith.constant 0 : index
    %c0_7 = arith.constant 0 : index
    %10 = vector.load %arg4[%c0_6, %c0_7] : memref<392x8xbf16, #tpu.memory_space<vmem>>, vector<392x8xbf16>
    %cst_8 = arith.constant dense<0.000000e+00> : vector<8x8xf32>
    %11 = tpu.matmul %9, %10, %cst_8 {dimension_numbers = #tpu.dot_dimension_numbers<[1], [0], [0], [1], [0, 0, 1, 1], [], []>} : vector<8x392xbf16>, vector<392x8xbf16>, vector<8x8xf32> -> vector<8x8xf32>
    %c0_9 = arith.constant 0 : index
    %c0_10 = arith.constant 0 : index
    %12 = vector.load %arg5[%c0_9, %c0_10] : memref<1x8xf32, #tpu.memory_space<vmem>>, vector<1x8xf32>
    %13 = vector.broadcast %12 : vector<1x8xf32> to vector<8x8xf32>
    %14 = arith.addf %11, %13 : vector<8x8xf32>
    %cst_11 = arith.constant 0.000000e+00 : f32
    %15 = vector.broadcast %cst_11 : f32 to vector<8x8xf32>
    %16 = arith.maximumf %14, %15 : vector<8x8xf32>
    %17 = arith.truncf %16 : vector<8x8xf32> to vector<8x8xbf16>
    %c0_12 = arith.constant 0 : index
    %c0_13 = arith.constant 0 : index
    %18 = vector.load %arg6[%c0_12, %c0_13] : memref<8x392xbf16, #tpu.memory_space<vmem>>, vector<8x392xbf16>
    %cst_14 = arith.constant dense<0.000000e+00> : vector<8x392xf32>
    %19 = tpu.matmul %17, %18, %cst_14 {dimension_numbers = #tpu.dot_dimension_numbers<[1], [0], [0], [1], [0, 0, 1, 1], [], []>} : vector<8x8xbf16>, vector<8x392xbf16>, vector<8x392xf32> -> vector<8x392xf32>
    %c0_15 = arith.constant 0 : index
    %c0_16 = arith.constant 0 : index
    %20 = vector.load %arg7[%c0_15, %c0_16] : memref<1x392xf32, #tpu.memory_space<vmem>>, vector<1x392xf32>
    %21 = vector.broadcast %20 : vector<1x392xf32> to vector<8x392xf32>
    %22 = arith.addf %19, %21 : vector<8x392xf32>
    %cst_17 = arith.constant 0.000000e+00 : f32
    %23 = vector.broadcast %cst_17 : f32 to vector<8x392xf32>
    %24 = arith.maximumf %22, %23 : vector<8x392xf32>
    %25 = arith.truncf %24 : vector<8x392xf32> to vector<8x392xbf16>
    %c0_18 = arith.constant 0 : index
    %c0_19 = arith.constant 0 : index
    %26 = vector.load %arg8[%c0_18, %c0_19] : memref<392x784xbf16, #tpu.memory_space<vmem>>, vector<392x784xbf16>
    %cst_20 = arith.constant dense<0.000000e+00> : vector<8x784xf32>
    %27 = tpu.matmul %25, %26, %cst_20 {dimension_numbers = #tpu.dot_dimension_numbers<[1], [0], [0], [1], [0, 0, 1, 1], [], []>} : vector<8x392xbf16>, vector<392x784xbf16>, vector<8x784xf32> -> vector<8x784xf32>
    %c0_21 = arith.constant 0 : index
    %c0_22 = arith.constant 0 : index
    %28 = vector.load %arg9[%c0_21, %c0_22] : memref<1x784xf32, #tpu.memory_space<vmem>>, vector<1x784xf32>
    %29 = vector.broadcast %28 : vector<1x784xf32> to vector<8x784xf32>
    %30 = arith.addf %27, %29 : vector<8x784xf32>
    %31 = arith.negf %30 : vector<8x784xf32>
    %32 = math.exp %31 : vector<8x784xf32>
    %cst_23 = arith.constant 1.000000e+00 : f32
    %33 = vector.broadcast %cst_23 : f32 to vector<8x784xf32>
    %34 = arith.addf %33, %32 : vector<8x784xf32>
    %35 = arith.divf %33, %34 : vector<8x784xf32>
    %c0_24 = arith.constant 0 : index
    %c0_25 = arith.constant 0 : index
    %36 = vector.load %arg10[%c0_24, %c0_25] : memref<8x784xf32, #tpu.memory_space<vmem>>, vector<8x784xf32>
    tpu.vector_store %arg10[%c0_24, %c0_25], %35 {strides = array<i32>} : memref<8x784xf32, #tpu.memory_space<vmem>>, vector<8x784xf32>,
    return
  }
  func.func @transform_0(%arg0: i32) -> (i32, i32) {
    %c0_i32 = arith.constant 0 : i32
    %c0_i32_0 = arith.constant 0 : i32
    return %arg0, %c0_i32 : i32, i32
  }
  func.func @transform_1(%arg0: i32) -> (i32, i32) {
    %c0_i32 = arith.constant 0 : i32
    %c0_i32_0 = arith.constant 0 : i32
    %c0_i32_1 = arith.constant 0 : i32
    return %c0_i32, %c0_i32_0 : i32, i32
  }
  func.func @transform_2(%arg0: i32) -> (i32, i32) {
    %c0_i32 = arith.constant 0 : i32
    %c0_i32_0 = arith.constant 0 : i32
    %c0_i32_1 = arith.constant 0 : i32
    return %c0_i32, %c0_i32_0 : i32, i32
  }
  func.func @transform_3(%arg0: i32) -> (i32, i32) {
    %c0_i32 = arith.constant 0 : i32
    %c0_i32_0 = arith.constant 0 : i32
    %c0_i32_1 = arith.constant 0 : i32
    return %c0_i32, %c0_i32_0 : i32, i32
  }
  func.func @transform_4(%arg0: i32) -> (i32, i32) {
    %c0_i32 = arith.constant 0 : i32
    %c0_i32_0 = arith.constant 0 : i32
    %c0_i32_1 = arith.constant 0 : i32
    return %c0_i32, %c0_i32_0 : i32, i32
  }
  func.func @transform_5(%arg0: i32) -> (i32, i32) {
    %c0_i32 = arith.constant 0 : i32
    %c0_i32_0 = arith.constant 0 : i32
    %c0_i32_1 = arith.constant 0 : i32
    return %c0_i32, %c0_i32_0 : i32, i32
  }
  func.func @transform_6(%arg0: i32) -> (i32, i32) {
    %c0_i32 = arith.constant 0 : i32
    %c0_i32_0 = arith.constant 0 : i32
    %c0_i32_1 = arith.constant 0 : i32
    return %c0_i32, %c0_i32_0 : i32, i32
  }
  func.func @transform_7(%arg0: i32) -> (i32, i32) {
    %c0_i32 = arith.constant 0 : i32
    %c0_i32_0 = arith.constant 0 : i32
    %c0_i32_1 = arith.constant 0 : i32
    return %c0_i32, %c0_i32_0 : i32, i32
  }
  func.func @transform_8(%arg0: i32) -> (i32, i32) {
    %c0_i32 = arith.constant 0 : i32
    %c0_i32_0 = arith.constant 0 : i32
    %c0_i32_1 = arith.constant 0 : i32
    return %c0_i32, %c0_i32_0 : i32, i32
  }
  func.func @transform_9(%arg0: i32) -> (i32, i32) {
    %c0_i32 = arith.constant 0 : i32
    %c0_i32_0 = arith.constant 0 : i32
    return %arg0, %c0_i32 : i32, i32
  }
}

</mosaic_0001>

<llo_original>
// kernel: tpu_custom_call.1
$region0: #{tpu_custom_call.1}
  #allocation0 [shape = 'u32[]', space=smem, size = 0x4, offset = 0x4, fixed_abs, tag = 'smem constant byte address 0x4 - core index']
  #allocation1 [shape = 'u32[72,128]{1,0:T(1,128)}', space=vmem, size = 0x9000, scoped, tag = 'internal scratch']
  %s0 = inlined_call_operand.vmem [shape: f32[8,784], index: 0, kind: input, shape index: {}]
  %s1 = inlined_call_operand.vmem [shape: bf16[784,392], index: 1, kind: input, shape index: {}]
  %s2 = inlined_call_operand.vmem [shape: f32[1,392], index: 2, kind: input, shape index: {}]
  %s3 = inlined_call_operand.vmem [shape: bf16[392,8], index: 3, kind: input, shape index: {}]
  %s4 = inlined_call_operand.vmem [shape: f32[1,8], index: 4, kind: input, shape index: {}]
  %s5 = inlined_call_operand.vmem [shape: bf16[8,392], index: 5, kind: input, shape index: {}]
  %s6 = inlined_call_operand.vmem [shape: f32[1,392], index: 6, kind: input, shape index: {}]
  %s7 = inlined_call_operand.vmem [shape: bf16[392,784], index: 7, kind: input, shape index: {}]
  %s8 = inlined_call_operand.vmem [shape: f32[1,784], index: 8, kind: input, shape index: {}]
  %s9 = inlined_call_operand.hbm [shape: f32[8,784], index: 9, kind: output, shape index: {}]
  %s10 = sld [smem:[#allocation0]]
  $region46: #{tpu_custom_call.1} parent=0
    _
  %s12 = ssub.s32 1, %s10
  %s13 = scalar_select 0, %s12, %s10
  $region1: #{tpu_custom_call.1} parent=0
    #allocation2 [shape = 'u8[28672]{0}', space=vmem, size = 0x7000, scoped, tag = 'output window, operand 0, single buffered']
    #allocation3 [shape = 's32[1]{0}', space=sflag, size = 0x4, scoped, tag = 'scoped memory for tpu_custom_call.1']
    %14 = vsyncpa [#allocation3], 0
    // Predicated region
    $region2: #{tpu_custom_call.1} parent=1 // pred_check
      _
    $region3: #{tpu_custom_call.1} parent=1 // pred_check_branch
      %16 = sbr.rel (0) target = $region5
    $region4: #{tpu_custom_call.1} parent=1 // pred_region
      _
    $region5: #{tpu_custom_call.1} parent=1 // pred_fallthru
      _
    // Predicated region
    $region6: #{tpu_custom_call.1} parent=1 // pred_check
      _
    $region7: #{tpu_custom_call.1} parent=1 // pred_check_branch
      %18 = sbr.rel (0) target = $region9
    $region8: #{tpu_custom_call.1} parent=1 // pred_region
      _
    $region9: #{tpu_custom_call.1} parent=1 // pred_fallthru
      _
    // Predicated region
    $region10: #{tpu_custom_call.1} parent=1 // pred_check
      _
    $region11: #{tpu_custom_call.1} parent=1 // pred_check_branch
      %20 = sbr.rel (0) target = $region13
    $region12: #{tpu_custom_call.1} parent=1 // pred_region
      _
    $region13: #{tpu_custom_call.1} parent=1 // pred_fallthru
      _
    // Predicated region
    $region14: #{tpu_custom_call.1} parent=1 // pred_check
      _
    $region15: #{tpu_custom_call.1} parent=1 // pred_check_branch
      %22 = sbr.rel (0) target = $region17
    $region16: #{tpu_custom_call.1} parent=1 // pred_region
      _
    $region17: #{tpu_custom_call.1} parent=1 // pred_fallthru
      _
    // Predicated region
    $region18: #{tpu_custom_call.1} parent=1 // pred_check
      _
    $region19: #{tpu_custom_call.1} parent=1 // pred_check_branch
      %24 = sbr.rel (0) target = $region21
    $region20: #{tpu_custom_call.1} parent=1 // pred_region
      _
    $region21: #{tpu_custom_call.1} parent=1 // pred_fallthru
      _
    // Predicated region
    $region22: #{tpu_custom_call.1} parent=1 // pred_check
      _
    $region23: #{tpu_custom_call.1} parent=1 // pred_check_branch
      %26 = sbr.rel (0) target = $region25
    $region24: #{tpu_custom_call.1} parent=1 // pred_region
      _
    $region25: #{tpu_custom_call.1} parent=1 // pred_fallthru
      _
    // Predicated region
    $region26: #{tpu_custom_call.1} parent=1 // pred_check
      _
    $region27: #{tpu_custom_call.1} parent=1 // pred_check_branch
      %28 = sbr.rel (0) target = $region29
    $region28: #{tpu_custom_call.1} parent=1 // pred_region
      _
    $region29: #{tpu_custom_call.1} parent=1 // pred_fallthru
      _
    // Predicated region
    $region30: #{tpu_custom_call.1} parent=1 // pred_check
      _
    $region31: #{tpu_custom_call.1} parent=1 // pred_check_branch
      %30 = sbr.rel (0) target = $region33
    $region32: #{tpu_custom_call.1} parent=1 // pred_region
      _
    $region33: #{tpu_custom_call.1} parent=1 // pred_fallthru
      _
    // Predicated region
    $region34: #{tpu_custom_call.1} parent=1 // pred_check
      _
    $region35: #{tpu_custom_call.1} parent=1 // pred_check_branch
      %32 = sbr.rel (0) target = $region37
    $region36: #{tpu_custom_call.1} parent=1 // pred_region
      _
    $region37: #{tpu_custom_call.1} parent=1 // pred_fallthru
      _
    %v34 = vld [vmem:[%s0] sm:$0xff]
    %v35 = vld [vmem:[%s0 + $0x8] sm:$0xff]
    %v36 = vld [vmem:[%s0 + $0x10] sm:$0xff]
    %v37 = vld [vmem:[%s0 + $0x18] sm:$0xff]
    %v38 = vld [vmem:[%s0 + $0x20] sm:$0xff]
    %v39 = vld [vmem:[%s0 + $0x28] sm:$0xff]
    %v40 = vld [vmem:[%s0 + $0x30] sm:$0xff]
    %v41 = vpack.c.bf16 %v34, %v34
    %v42 = vpack.c.bf16 %v35, %v35
    %v43 = vpack.c.bf16 %v36, %v36
    %v44 = vpack.c.bf16 %v37, %v37
    %v45 = vpack.c.bf16 %v38, %v38
    %v46 = vpack.c.bf16 %v39, %v39
    %v47 = vpack.c.bf16 %v40, %v40
    %v48 = vld [vmem:[%s1] sm:$0xff]
    %v49 = vld [vmem:[%s1 + $0x8] sm:$0xff]
    %v50 = vld [vmem:[%s1 + $0x10] sm:$0xff]
    %v51 = vld [vmem:[%s1 + $0x18] sm:$0xff]
    %v52 = vld [vmem:[%s1 + $0x20] sm:$0xff]
    %v53 = vld [vmem:[%s1 + $0x28] sm:$0xff]
    %v54 = vld [vmem:[%s1 + $0x30] sm:$0xff]
    %v55 = vld [vmem:[%s1 + $0x38] sm:$0xff]
    %v56 = vld [vmem:[%s1 + $0x40] sm:$0xff]
    %v57 = vld [vmem:[%s1 + $0x48] sm:$0xff]
    %v58 = vld [vmem:[%s1 + $0x50] sm:$0xff]
    %v59 = vld [vmem:[%s1 + $0x58] sm:$0xff]
    %v60 = vld [vmem:[%s1 + $0x60] sm:$0xff]
    %v61 = vld [vmem:[%s1 + $0x68] sm:$0xff]
    %v62 = vld [vmem:[%s1 + $0x70] sm:$0xff]
    %v63 = vld [vmem:[%s1 + $0x78] sm:$0xff]
    %v64 = vld [vmem:[%s1 + $0x80] sm:$0xff]
    %v65 = vld [vmem:[%s1 + $0x88] sm:$0xff]
    %v66 = vld [vmem:[%s1 + $0x90] sm:$0xff]
    %v67 = vld [vmem:[%s1 + $0x98] sm:$0xff]
    %v68 = vld [vmem:[%s1 + $0xa0] sm:$0xff]
    %v69 = vld [vmem:[%s1 + $0xa8] sm:$0xff]
    %v70 = vld [vmem:[%s1 + $0xb0] sm:$0xff]
    %v71 = vld [vmem:[%s1 + $0xb8] sm:$0xff]
    %v72 = vld [vmem:[%s1 + $0xc0] sm:$0xff]
    %v73 = vld [vmem:[%s1 + $0xc8] sm:$0xff]
    %v74 = vld [vmem:[%s1 + $0xd0] sm:$0xff]
    %v75 = vld [vmem:[%s1 + $0xd8] sm:$0xff]
    %v76 = vld [vmem:[%s1 + $0xe0] sm:$0xff]
    %v77 = vld [vmem:[%s1 + $0xe8] sm:$0xff]
    %v78 = vld [vmem:[%s1 + $0xf0] sm:$0xff]
    %v79 = vld [vmem:[%s1 + $0xf8] sm:$0xff]
    %v80 = vld [vmem:[%s1 + $0x100] sm:$0xff]
    %v81 = vld [vmem:[%s1 + $0x108] sm:$0xff]
    %v82 = vld [vmem:[%s1 + $0x110] sm:$0xff]
    %v83 = vld [vmem:[%s1 + $0x118] sm:$0xff]
    %v84 = vld [vmem:[%s1 + $0x120] sm:$0xff]
    %v85 = vld [vmem:[%s1 + $0x128] sm:$0xff]
    %v86 = vld [vmem:[%s1 + $0x130] sm:$0xff]
    %v87 = vld [vmem:[%s1 + $0x138] sm:$0xff]
    %v88 = vld [vmem:[%s1 + $0x140] sm:$0xff]
    %v89 = vld [vmem:[%s1 + $0x148] sm:$0xff]
    %v90 = vld [vmem:[%s1 + $0x150] sm:$0xff]
    %v91 = vld [vmem:[%s1 + $0x158] sm:$0xff]
    %v92 = vld [vmem:[%s1 + $0x160] sm:$0xff]
    %v93 = vld [vmem:[%s1 + $0x168] sm:$0xff]
    %v94 = vld [vmem:[%s1 + $0x170] sm:$0xff]
    %v95 = vld [vmem:[%s1 + $0x178] sm:$0xff]
    %v96 = vld [vmem:[%s1 + $0x180] sm:$0xff]
    %v97 = vld [vmem:[%s1 + $0x188] sm:$0xff]
    %v98 = vld [vmem:[%s1 + $0x190] sm:$0xff]
    %v99 = vld [vmem:[%s1 + $0x198] sm:$0xff]
    %v100 = vld [vmem:[%s1 + $0x1a0] sm:$0xff]
    %v101 = vld [vmem:[%s1 + $0x1a8] sm:$0xff]
    %v102 = vld [vmem:[%s1 + $0x1b0] sm:$0xff]
    %v103 = vld [vmem:[%s1 + $0x1b8] sm:$0xff]
    %v104 = vld [vmem:[%s1 + $0x1c0] sm:$0xff]
    %v105 = vld [vmem:[%s1 + $0x1c8] sm:$0xff]
    %v106 = vld [vmem:[%s1 + $0x1d0] sm:$0xff]
    %v107 = vld [vmem:[%s1 + $0x1d8] sm:$0xff]
    %v108 = vld [vmem:[%s1 + $0x1e0] sm:$0xff]
    %v109 = vld [vmem:[%s1 + $0x1e8] sm:$0xff]
    %v110 = vld [vmem:[%s1 + $0x1f0] sm:$0xff]
    %v111 = vld [vmem:[%s1 + $0x1f8] sm:$0xff]
    %v112 = vld [vmem:[%s1 + $0x200] sm:$0xff]
    %v113 = vld [vmem:[%s1 + $0x208] sm:$0xff]
    %v114 = vld [vmem:[%s1 + $0x210] sm:$0xff]
    %v115 = vld [vmem:[%s1 + $0x218] sm:$0xff]
    %v116 = vld [vmem:[%s1 + $0x220] sm:$0xff]
    %v117 = vld [vmem:[%s1 + $0x228] sm:$0xff]
    %v118 = vld [vmem:[%s1 + $0x230] sm:$0xff]
    %v119 = vld [vmem:[%s1 + $0x238] sm:$0xff]
    %v120 = vld [vmem:[%s1 + $0x240] sm:$0xff]
    %v121 = vld [vmem:[%s1 + $0x248] sm:$0xff]
    %v122 = vld [vmem:[%s1 + $0x250] sm:$0xff]
    %v123 = vld [vmem:[%s1 + $0x258] sm:$0xff]
    %v124 = vld [vmem:[%s1 + $0x260] sm:$0xff]
    %v125 = vld [vmem:[%s1 + $0x268] sm:$0xff]
    %v126 = vld [vmem:[%s1 + $0x270] sm:$0xff]
    %v127 = vld [vmem:[%s1 + $0x278] sm:$0xff]
    %v128 = vld [vmem:[%s1 + $0x280] sm:$0xff]
    %v129 = vld [vmem:[%s1 + $0x288] sm:$0xff]
    %v130 = vld [vmem:[%s1 + $0x290] sm:$0xff]
    %v131 = vld [vmem:[%s1 + $0x298] sm:$0xff]
    %v132 = vld [vmem:[%s1 + $0x2a0] sm:$0xff]
    %v133 = vld [vmem:[%s1 + $0x2a8] sm:$0xff]
    %v134 = vld [vmem:[%s1 + $0x2b0] sm:$0xff]
    %v135 = vld [vmem:[%s1 + $0x2b8] sm:$0xff]
    %v136 = vld [vmem:[%s1 + $0x2c0] sm:$0xff]
    %v137 = vld [vmem:[%s1 + $0x2c8] sm:$0xff]
    %v138 = vld [vmem:[%s1 + $0x2d0] sm:$0xff]
    %v139 = vld [vmem:[%s1 + $0x2d8] sm:$0xff]
    %v140 = vld [vmem:[%s1 + $0x2e0] sm:$0xff]
    %v141 = vld [vmem:[%s1 + $0x2e8] sm:$0xff]
    %v142 = vld [vmem:[%s1 + $0x2f0] sm:$0xff]
    %v143 = vld [vmem:[%s1 + $0x2f8] sm:$0xff]
    %v144 = vld [vmem:[%s1 + $0x300] sm:$0xff]
    %v145 = vld [vmem:[%s1 + $0x308] sm:$0xff]
    %v146 = vld [vmem:[%s1 + $0x310] sm:$0xff]
    %v147 = vld [vmem:[%s1 + $0x318] sm:$0xff]
    %v148 = vld [vmem:[%s1 + $0x320] sm:$0xff]
    %v149 = vld [vmem:[%s1 + $0x328] sm:$0xff]
    %v150 = vld [vmem:[%s1 + $0x330] sm:$0xff]
    %v151 = vld [vmem:[%s1 + $0x338] sm:$0xff]
    %v152 = vld [vmem:[%s1 + $0x340] sm:$0xff]
    %v153 = vld [vmem:[%s1 + $0x348] sm:$0xff]
    %v154 = vld [vmem:[%s1 + $0x350] sm:$0xff]
    %v155 = vld [vmem:[%s1 + $0x358] sm:$0xff]
    %v156 = vld [vmem:[%s1 + $0x360] sm:$0xff]
    %v157 = vld [vmem:[%s1 + $0x368] sm:$0xff]
    %v158 = vld [vmem:[%s1 + $0x370] sm:$0xff]
    %v159 = vld [vmem:[%s1 + $0x378] sm:$0xff]
    %v160 = vld [vmem:[%s1 + $0x380] sm:$0xff]
    %v161 = vld [vmem:[%s1 + $0x388] sm:$0xff]
    %v162 = vld [vmem:[%s1 + $0x390] sm:$0xff]
    %v163 = vld [vmem:[%s1 + $0x398] sm:$0xff]
    %v164 = vld [vmem:[%s1 + $0x3a0] sm:$0xff]
    %v165 = vld [vmem:[%s1 + $0x3a8] sm:$0xff]
    %v166 = vld [vmem:[%s1 + $0x3b0] sm:$0xff]
    %v167 = vld [vmem:[%s1 + $0x3b8] sm:$0xff]
    %v168 = vld [vmem:[%s1 + $0x3c0] sm:$0xff]
    %v169 = vld [vmem:[%s1 + $0x3c8] sm:$0xff]
    %v170 = vld [vmem:[%s1 + $0x3d0] sm:$0xff]
    %v171 = vld [vmem:[%s1 + $0x3d8] sm:$0xff]
    %v172 = vld [vmem:[%s1 + $0x3e0] sm:$0xff]
    %v173 = vld [vmem:[%s1 + $0x3e8] sm:$0xff]
    %v174 = vld [vmem:[%s1 + $0x3f0] sm:$0xff]
    %v175 = vld [vmem:[%s1 + $0x3f8] sm:$0xff]
    %v176 = vld [vmem:[%s1 + $0x400] sm:$0xff]
    %v177 = vld [vmem:[%s1 + $0x408] sm:$0xff]
    %v178 = vld [vmem:[%s1 + $0x410] sm:$0xff]
    %v179 = vld [vmem:[%s1 + $0x418] sm:$0xff]
    %v180 = vld [vmem:[%s1 + $0x420] sm:$0xff]
    %v181 = vld [vmem:[%s1 + $0x428] sm:$0xff]
    %v182 = vld [vmem:[%s1 + $0x430] sm:$0xff]
    %v183 = vld [vmem:[%s1 + $0x438] sm:$0xff]
    %v184 = vld [vmem:[%s1 + $0x440] sm:$0xff]
    %v185 = vld [vmem:[%s1 + $0x448] sm:$0xff]
    %v186 = vld [vmem:[%s1 + $0x450] sm:$0xff]
    %v187 = vld [vmem:[%s1 + $0x458] sm:$0xff]
    %v188 = vld [vmem:[%s1 + $0x460] sm:$0xff]
    %v189 = vld [vmem:[%s1 + $0x468] sm:$0xff]
    %v190 = vld [vmem:[%s1 + $0x470] sm:$0xff]
    %v191 = vld [vmem:[%s1 + $0x478] sm:$0xff]
    %v192 = vld [vmem:[%s1 + $0x480] sm:$0xff]
    %v193 = vld [vmem:[%s1 + $0x488] sm:$0xff]
    %v194 = vld [vmem:[%s1 + $0x490] sm:$0xff]
    %v195 = vld [vmem:[%s1 + $0x498] sm:$0xff]
    %v196 = vld [vmem:[%s1 + $0x4a0] sm:$0xff]
    %v197 = vld [vmem:[%s1 + $0x4a8] sm:$0xff]
    %v198 = vld [vmem:[%s1 + $0x4b0] sm:$0xff]
    %v199 = vld [vmem:[%s1 + $0x4b8] sm:$0xff]
    %v200 = vld [vmem:[%s1 + $0x4c0] sm:$0xff]
    %v201 = vld [vmem:[%s1 + $0x4c8] sm:$0xff]
    %v202 = vld [vmem:[%s1 + $0x4d0] sm:$0xff]
    %v203 = vld [vmem:[%s1 + $0x4d8] sm:$0xff]
    %v204 = vld [vmem:[%s1 + $0x4e0] sm:$0xff]
    %v205 = vld [vmem:[%s1 + $0x4e8] sm:$0xff]
    %v206 = vld [vmem:[%s1 + $0x4f0] sm:$0xff]
    %v207 = vld [vmem:[%s1 + $0x4f8] sm:$0xff]
    %v208 = vld [vmem:[%s1 + $0x500] sm:$0xff]
    %v209 = vld [vmem:[%s1 + $0x508] sm:$0xff]
    %v210 = vld [vmem:[%s1 + $0x510] sm:$0xff]
    %v211 = vld [vmem:[%s1 + $0x518] sm:$0xff]
    %v212 = vld [vmem:[%s1 + $0x520] sm:$0xff]
    %v213 = vld [vmem:[%s1 + $0x528] sm:$0xff]
    %v214 = vld [vmem:[%s1 + $0x530] sm:$0xff]
    %v215 = vld [vmem:[%s1 + $0x538] sm:$0xff]
    %v216 = vld [vmem:[%s1 + $0x540] sm:$0xff]
    %v217 = vld [vmem:[%s1 + $0x548] sm:$0xff]
    %v218 = vld [vmem:[%s1 + $0x550] sm:$0xff]
    %v219 = vld [vmem:[%s1 + $0x558] sm:$0xff]
    %v220 = vld [vmem:[%s1 + $0x560] sm:$0xff]
    %v221 = vld [vmem:[%s1 + $0x568] sm:$0xff]
    %v222 = vld [vmem:[%s1 + $0x570] sm:$0xff]
    %v223 = vld [vmem:[%s1 + $0x578] sm:$0xff]
    %v224 = vld [vmem:[%s1 + $0x580] sm:$0xff]
    %v225 = vld [vmem:[%s1 + $0x588] sm:$0xff]
    %v226 = vld [vmem:[%s1 + $0x590] sm:$0xff]
    %v227 = vld [vmem:[%s1 + $0x598] sm:$0xff]
    %v228 = vld [vmem:[%s1 + $0x5a0] sm:$0xff]
    %v229 = vld [vmem:[%s1 + $0x5a8] sm:$0xff]
    %v230 = vld [vmem:[%s1 + $0x5b0] sm:$0xff]
    %v231 = vld [vmem:[%s1 + $0x5b8] sm:$0xff]
    %v232 = vld [vmem:[%s1 + $0x5c0] sm:$0xff]
    %v233 = vld [vmem:[%s1 + $0x5c8] sm:$0xff]
    %v234 = vld [vmem:[%s1 + $0x5d0] sm:$0xff]
    %v235 = vld [vmem:[%s1 + $0x5d8] sm:$0xff]
    %v236 = vld [vmem:[%s1 + $0x5e0] sm:$0xff]
    %v237 = vld [vmem:[%s1 + $0x5e8] sm:$0xff]
    %v238 = vld [vmem:[%s1 + $0x5f0] sm:$0xff]
    %v239 = vld [vmem:[%s1 + $0x5f8] sm:$0xff]
    %v240 = vld [vmem:[%s1 + $0x600] sm:$0xff]
    %v241 = vld [vmem:[%s1 + $0x608] sm:$0xff]
    %v242 = vld [vmem:[%s1 + $0x610] sm:$0xff]
    %v243 = vld [vmem:[%s1 + $0x618] sm:$0xff]
    %v244 = vld [vmem:[%s2] sm:$0xf]
    %v246 = vperm.slane %v244, 0
    %v247 = vperm.slane %v244, 1
    %v248 = vperm.slane %v244, 2
    %v249 = vperm.slane %v244, 3
    %v450 = vunpack.c.l.b16 %v48
    %v451 = vunpack.c.h.b16 %v48
    %v452 = vunpack.c.l.b16 %v49
    %v453 = vunpack.c.h.b16 %v49
    %v454 = vunpack.c.l.b16 %v50
    %v455 = vunpack.c.h.b16 %v50
    %v456 = vunpack.c.l.b16 %v51
    %v457 = vunpack.c.h.b16 %v51
    %v458 = vunpack.c.l.b16 %v52
    %v459 = vunpack.c.h.b16 %v52
    %v460 = vunpack.c.l.b16 %v53
    %v461 = vunpack.c.h.b16 %v53
    %v462 = vunpack.c.l.b16 %v54
    %v463 = vunpack.c.h.b16 %v54
    %v464 = vunpack.c.l.b16 %v55
    %v465 = vunpack.c.h.b16 %v55
    %v466 = vunpack.c.l.b16 %v56
    %v467 = vunpack.c.h.b16 %v56
    %v468 = vunpack.c.l.b16 %v57
    %v469 = vunpack.c.h.b16 %v57
    %v470 = vunpack.c.l.b16 %v58
    %v471 = vunpack.c.h.b16 %v58
    %v472 = vunpack.c.l.b16 %v59
    %v473 = vunpack.c.h.b16 %v59
    %v474 = vunpack.c.l.b16 %v60
    %v475 = vunpack.c.h.b16 %v60
    %v476 = vunpack.c.l.b16 %v61
    %v477 = vunpack.c.h.b16 %v61
    %v478 = vunpack.c.l.b16 %v62
    %v479 = vunpack.c.h.b16 %v62
    %v480 = vunpack.c.l.b16 %v63
    %v481 = vunpack.c.h.b16 %v63
    %v482 = vunpack.c.l.b16 %v64
    %v483 = vunpack.c.h.b16 %v64
    %v484 = vunpack.c.l.b16 %v65
    %v485 = vunpack.c.h.b16 %v65
    %v486 = vunpack.c.l.b16 %v66
    %v487 = vunpack.c.h.b16 %v66
    %v488 = vunpack.c.l.b16 %v67
    %v489 = vunpack.c.h.b16 %v67
    %v490 = vunpack.c.l.b16 %v68
    %v491 = vunpack.c.h.b16 %v68
    %v492 = vunpack.c.l.b16 %v69
    %v493 = vunpack.c.h.b16 %v69
    %v494 = vunpack.c.l.b16 %v70
    %v495 = vunpack.c.h.b16 %v70
    %v496 = vunpack.c.l.b16 %v71
    %v497 = vunpack.c.h.b16 %v71
    %v498 = vunpack.c.l.b16 %v72
    %v499 = vunpack.c.h.b16 %v72
    %v500 = vunpack.c.l.b16 %v73
    %v501 = vunpack.c.h.b16 %v73
    %v502 = vunpack.c.l.b16 %v74
    %v503 = vunpack.c.h.b16 %v74
    %v504 = vunpack.c.l.b16 %v75
    %v505 = vunpack.c.h.b16 %v75
    %v506 = vunpack.c.l.b16 %v76
    %v507 = vunpack.c.h.b16 %v76
    %v508 = vunpack.c.l.b16 %v77
    %v509 = vunpack.c.h.b16 %v77
    %v510 = vunpack.c.l.b16 %v78
    %v511 = vunpack.c.h.b16 %v78
    %v512 = vunpack.c.l.b16 %v79
    %v513 = vunpack.c.h.b16 %v79
    %v514 = vunpack.c.l.b16 %v80
    %v515 = vunpack.c.h.b16 %v80
    %v516 = vunpack.c.l.b16 %v81
    %v517 = vunpack.c.h.b16 %v81
    %v518 = vunpack.c.l.b16 %v82
    %v519 = vunpack.c.h.b16 %v82
    %v520 = vunpack.c.l.b16 %v83
    %v521 = vunpack.c.h.b16 %v83
    %v522 = vunpack.c.l.b16 %v84
    %v523 = vunpack.c.h.b16 %v84
    %v524 = vunpack.c.l.b16 %v85
    %v525 = vunpack.c.h.b16 %v85
    %v526 = vunpack.c.l.b16 %v86
    %v527 = vunpack.c.h.b16 %v86
    %v528 = vunpack.c.l.b16 %v87
    %v529 = vunpack.c.h.b16 %v87
    %v530 = vunpack.c.l.b16 %v88
    %v531 = vunpack.c.h.b16 %v88
    %v532 = vunpack.c.l.b16 %v89
    %v533 = vunpack.c.h.b16 %v89
    %v534 = vunpack.c.l.b16 %v90
    %v535 = vunpack.c.h.b16 %v90
    %v536 = vunpack.c.l.b16 %v91
    %v537 = vunpack.c.h.b16 %v91
    %v538 = vunpack.c.l.b16 %v92
    %v539 = vunpack.c.h.b16 %v92
    %v540 = vunpack.c.l.b16 %v93
    %v541 = vunpack.c.h.b16 %v93
    %v542 = vunpack.c.l.b16 %v94
    %v543 = vunpack.c.h.b16 %v94
    %v544 = vunpack.c.l.b16 %v95
    %v545 = vunpack.c.h.b16 %v95
    %v546 = vunpack.c.l.b16 %v96
    %v547 = vunpack.c.h.b16 %v96
    %v548 = vunpack.c.l.b16 %v97
    %v549 = vunpack.c.h.b16 %v97
    %v550 = vunpack.c.l.b16 %v98
    %v551 = vunpack.c.h.b16 %v98
    %v552 = vunpack.c.l.b16 %v99
    %v553 = vunpack.c.h.b16 %v99
    %v554 = vunpack.c.l.b16 %v100
    %v555 = vunpack.c.h.b16 %v100
    %v556 = vunpack.c.l.b16 %v101
    %v557 = vunpack.c.h.b16 %v101
    %v558 = vunpack.c.l.b16 %v102
    %v559 = vunpack.c.h.b16 %v102
    %v560 = vunpack.c.l.b16 %v103
    %v561 = vunpack.c.h.b16 %v103
    %v562 = vunpack.c.l.b16 %v104
    %v563 = vunpack.c.h.b16 %v104
    %v564 = vunpack.c.l.b16 %v105
    %v565 = vunpack.c.h.b16 %v105
    %v566 = vunpack.c.l.b16 %v106
    %v567 = vunpack.c.h.b16 %v106
    %v568 = vunpack.c.l.b16 %v107
    %v569 = vunpack.c.h.b16 %v107
    %v570 = vunpack.c.l.b16 %v108
    %v571 = vunpack.c.h.b16 %v108
    %v572 = vunpack.c.l.b16 %v109
    %v573 = vunpack.c.h.b16 %v109
    %v574 = vunpack.c.l.b16 %v110
    %v575 = vunpack.c.h.b16 %v110
    %v576 = vunpack.c.l.b16 %v111
    %v577 = vunpack.c.h.b16 %v111
    %v578 = vunpack.c.l.b16 %v112
    %v579 = vunpack.c.h.b16 %v112
    %v580 = vunpack.c.l.b16 %v113
    %v581 = vunpack.c.h.b16 %v113
    %v582 = vunpack.c.l.b16 %v114
    %v583 = vunpack.c.h.b16 %v114
    %v584 = vunpack.c.l.b16 %v115
    %v585 = vunpack.c.h.b16 %v115
    %v586 = vunpack.c.l.b16 %v116
    %v587 = vunpack.c.h.b16 %v116
    %v588 = vunpack.c.l.b16 %v117
    %v589 = vunpack.c.h.b16 %v117
    %v590 = vunpack.c.l.b16 %v118
    %v591 = vunpack.c.h.b16 %v118
    %v592 = vunpack.c.l.b16 %v119
    %v593 = vunpack.c.h.b16 %v119
    %v594 = vunpack.c.l.b16 %v120
    %v595 = vunpack.c.h.b16 %v120
    %v596 = vunpack.c.l.b16 %v121
    %v597 = vunpack.c.h.b16 %v121
    %v598 = vunpack.c.l.b16 %v122
    %v599 = vunpack.c.h.b16 %v122
    %v600 = vunpack.c.l.b16 %v123
    %v601 = vunpack.c.h.b16 %v123
    %v602 = vunpack.c.l.b16 %v124
    %v603 = vunpack.c.h.b16 %v124
    %v604 = vunpack.c.l.b16 %v125
    %v605 = vunpack.c.h.b16 %v125
    %v606 = vunpack.c.l.b16 %v126
    %v607 = vunpack.c.h.b16 %v126
    %v608 = vunpack.c.l.b16 %v127
    %v609 = vunpack.c.h.b16 %v127
    %v610 = vunpack.c.l.b16 %v128
    %v611 = vunpack.c.h.b16 %v128
    %v612 = vunpack.c.l.b16 %v129
    %v613 = vunpack.c.h.b16 %v129
    %v614 = vunpack.c.l.b16 %v130
    %v615 = vunpack.c.h.b16 %v130
    %v616 = vunpack.c.l.b16 %v131
    %v617 = vunpack.c.h.b16 %v131
    %v618 = vunpack.c.l.b16 %v132
    %v619 = vunpack.c.h.b16 %v132
    %v620 = vunpack.c.l.b16 %v133
    %v621 = vunpack.c.h.b16 %v133
    %v622 = vunpack.c.l.b16 %v134
    %v623 = vunpack.c.h.b16 %v134
    %v624 = vunpack.c.l.b16 %v135
    %v625 = vunpack.c.h.b16 %v135
    %v626 = vunpack.c.l.b16 %v136
    %v627 = vunpack.c.h.b16 %v136
    %v628 = vunpack.c.l.b16 %v137
    %v629 = vunpack.c.h.b16 %v137
    %v630 = vunpack.c.l.b16 %v138
    %v631 = vunpack.c.h.b16 %v138
    %v632 = vunpack.c.l.b16 %v139
    %v633 = vunpack.c.h.b16 %v139
    %v634 = vunpack.c.l.b16 %v140
    %v635 = vunpack.c.h.b16 %v140
    %v636 = vunpack.c.l.b16 %v141
    %v637 = vunpack.c.h.b16 %v141
    %v638 = vunpack.c.l.b16 %v142
    %v639 = vunpack.c.h.b16 %v142
    %v640 = vunpack.c.l.b16 %v143
    %v641 = vunpack.c.h.b16 %v143
    %v642 = vunpack.c.l.b16 %v144
    %v643 = vunpack.c.h.b16 %v144
    %v644 = vunpack.c.l.b16 %v145
    %v645 = vunpack.c.h.b16 %v145
    %v646 = vunpack.c.l.b16 %v146
    %v647 = vunpack.c.h.b16 %v146
    %v648 = vunpack.c.l.b16 %v147
    %v649 = vunpack.c.h.b16 %v147
    %v650 = vunpack.c.l.b16 %v148
    %v651 = vunpack.c.h.b16 %v148
    %v652 = vunpack.c.l.b16 %v149
    %v653 = vunpack.c.h.b16 %v149
    %v654 = vunpack.c.l.b16 %v150
    %v655 = vunpack.c.h.b16 %v150
    %v656 = vunpack.c.l.b16 %v151
    %v657 = vunpack.c.h.b16 %v151
    %v658 = vunpack.c.l.b16 %v152
    %v659 = vunpack.c.h.b16 %v152
    %v660 = vunpack.c.l.b16 %v153
    %v661 = vunpack.c.h.b16 %v153
    %v662 = vunpack.c.l.b16 %v154
    %v663 = vunpack.c.h.b16 %v154
    %v664 = vunpack.c.l.b16 %v155
    %v665 = vunpack.c.h.b16 %v155
    %v666 = vunpack.c.l.b16 %v156
    %v667 = vunpack.c.h.b16 %v156
    %v668 = vunpack.c.l.b16 %v157
    %v669 = vunpack.c.h.b16 %v157
    %v670 = vunpack.c.l.b16 %v158
    %v671 = vunpack.c.h.b16 %v158
    %v672 = vunpack.c.l.b16 %v159
    %v673 = vunpack.c.h.b16 %v159
    %v674 = vunpack.c.l.b16 %v160
    %v675 = vunpack.c.h.b16 %v160
    %v676 = vunpack.c.l.b16 %v161
    %v677 = vunpack.c.h.b16 %v161
    %v678 = vunpack.c.l.b16 %v162
    %v679 = vunpack.c.h.b16 %v162
    %v680 = vunpack.c.l.b16 %v163
    %v681 = vunpack.c.h.b16 %v163
    %v682 = vunpack.c.l.b16 %v164
    %v683 = vunpack.c.h.b16 %v164
    %v684 = vunpack.c.l.b16 %v165
    %v685 = vunpack.c.h.b16 %v165
    %v686 = vunpack.c.l.b16 %v166
    %v687 = vunpack.c.h.b16 %v166
    %v688 = vunpack.c.l.b16 %v167
    %v689 = vunpack.c.h.b16 %v167
    %v690 = vunpack.c.l.b16 %v168
    %v691 = vunpack.c.h.b16 %v168
    %v692 = vunpack.c.l.b16 %v169
    %v693 = vunpack.c.h.b16 %v169
    %v694 = vunpack.c.l.b16 %v170
    %v695 = vunpack.c.h.b16 %v170
    %v696 = vunpack.c.l.b16 %v171
    %v697 = vunpack.c.h.b16 %v171
    %v698 = vunpack.c.l.b16 %v172
    %v699 = vunpack.c.h.b16 %v172
    %v700 = vunpack.c.l.b16 %v173
    %v701 = vunpack.c.h.b16 %v173
    %v702 = vunpack.c.l.b16 %v174
    %v703 = vunpack.c.h.b16 %v174
    %v704 = vunpack.c.l.b16 %v175
    %v705 = vunpack.c.h.b16 %v175
    %v706 = vunpack.c.l.b16 %v176
    %v707 = vunpack.c.h.b16 %v176
    %v708 = vunpack.c.l.b16 %v177
    %v709 = vunpack.c.h.b16 %v177
    %v710 = vunpack.c.l.b16 %v178
    %v711 = vunpack.c.h.b16 %v178
    %v712 = vunpack.c.l.b16 %v179
    %v713 = vunpack.c.h.b16 %v179
    %v714 = vunpack.c.l.b16 %v180
    %v715 = vunpack.c.h.b16 %v180
    %v716 = vunpack.c.l.b16 %v181
    %v717 = vunpack.c.h.b16 %v181
    %v718 = vunpack.c.l.b16 %v182
    %v719 = vunpack.c.h.b16 %v182
    %v720 = vunpack.c.l.b16 %v183
    %v721 = vunpack.c.h.b16 %v183
    %v722 = vunpack.c.l.b16 %v184
    %v723 = vunpack.c.h.b16 %v184
    %v724 = vunpack.c.l.b16 %v185
    %v725 = vunpack.c.h.b16 %v185
    %v726 = vunpack.c.l.b16 %v186
    %v727 = vunpack.c.h.b16 %v186
    %v728 = vunpack.c.l.b16 %v187
    %v729 = vunpack.c.h.b16 %v187
    %v730 = vunpack.c.l.b16 %v188
    %v731 = vunpack.c.h.b16 %v188
    %v732 = vunpack.c.l.b16 %v189
    %v733 = vunpack.c.h.b16 %v189
    %v734 = vunpack.c.l.b16 %v190
    %v735 = vunpack.c.h.b16 %v190
    %v736 = vunpack.c.l.b16 %v191
    %v737 = vunpack.c.h.b16 %v191
    %v738 = vunpack.c.l.b16 %v192
    %v739 = vunpack.c.h.b16 %v192
    %v740 = vunpack.c.l.b16 %v193
    %v741 = vunpack.c.h.b16 %v193
    %v742 = vunpack.c.l.b16 %v194
    %v743 = vunpack.c.h.b16 %v194
    %v744 = vunpack.c.l.b16 %v195
    %v745 = vunpack.c.h.b16 %v195
    %v746 = vunpack.c.l.b16 %v196
    %v747 = vunpack.c.h.b16 %v196
    %v748 = vunpack.c.l.b16 %v197
    %v749 = vunpack.c.h.b16 %v197
    %v750 = vunpack.c.l.b16 %v198
    %v751 = vunpack.c.h.b16 %v198
    %v752 = vunpack.c.l.b16 %v199
    %v753 = vunpack.c.h.b16 %v199
    %v754 = vunpack.c.l.b16 %v200
    %v755 = vunpack.c.h.b16 %v200
    %v756 = vunpack.c.l.b16 %v201
    %v757 = vunpack.c.h.b16 %v201
    %v758 = vunpack.c.l.b16 %v202
    %v759 = vunpack.c.h.b16 %v202
    %v760 = vunpack.c.l.b16 %v203
    %v761 = vunpack.c.h.b16 %v203
    %v762 = vunpack.c.l.b16 %v204
    %v763 = vunpack.c.h.b16 %v204
    %v764 = vunpack.c.l.b16 %v205
    %v765 = vunpack.c.h.b16 %v205
    %v766 = vunpack.c.l.b16 %v206
    %v767 = vunpack.c.h.b16 %v206
    %v768 = vunpack.c.l.b16 %v207
    %v769 = vunpack.c.h.b16 %v207
    %v770 = vunpack.c.l.b16 %v208
    %v771 = vunpack.c.h.b16 %v208
    %v772 = vunpack.c.l.b16 %v209
    %v773 = vunpack.c.h.b16 %v209
    %v774 = vunpack.c.l.b16 %v210
    %v775 = vunpack.c.h.b16 %v210
    %v776 = vunpack.c.l.b16 %v211
    %v777 = vunpack.c.h.b16 %v211
    %v778 = vunpack.c.l.b16 %v212
    %v779 = vunpack.c.h.b16 %v212
    %v780 = vunpack.c.l.b16 %v213
    %v781 = vunpack.c.h.b16 %v213
    %v782 = vunpack.c.l.b16 %v214
    %v783 = vunpack.c.h.b16 %v214
    %v784 = vunpack.c.l.b16 %v215
    %v785 = vunpack.c.h.b16 %v215
    %v786 = vunpack.c.l.b16 %v216
    %v787 = vunpack.c.h.b16 %v216
    %v788 = vunpack.c.l.b16 %v217
    %v789 = vunpack.c.h.b16 %v217
    %v790 = vunpack.c.l.b16 %v218
    %v791 = vunpack.c.h.b16 %v218
    %v792 = vunpack.c.l.b16 %v219
    %v793 = vunpack.c.h.b16 %v219
    %v794 = vunpack.c.l.b16 %v220
    %v795 = vunpack.c.h.b16 %v220
    %v796 = vunpack.c.l.b16 %v221
    %v797 = vunpack.c.h.b16 %v221
    %v798 = vunpack.c.l.b16 %v222
    %v799 = vunpack.c.h.b16 %v222
    %v800 = vunpack.c.l.b16 %v223
    %v801 = vunpack.c.h.b16 %v223
    %v802 = vunpack.c.l.b16 %v224
    %v803 = vunpack.c.h.b16 %v224
    %v804 = vunpack.c.l.b16 %v225
    %v805 = vunpack.c.h.b16 %v225
    %v806 = vunpack.c.l.b16 %v226
    %v807 = vunpack.c.h.b16 %v226
    %v808 = vunpack.c.l.b16 %v227
    %v809 = vunpack.c.h.b16 %v227
    %v810 = vunpack.c.l.b16 %v228
    %v811 = vunpack.c.h.b16 %v228
    %v812 = vunpack.c.l.b16 %v229
    %v813 = vunpack.c.h.b16 %v229
    %v814 = vunpack.c.l.b16 %v230
    %v815 = vunpack.c.h.b16 %v230
    %v816 = vunpack.c.l.b16 %v231
    %v817 = vunpack.c.h.b16 %v231
    %v818 = vunpack.c.l.b16 %v232
    %v819 = vunpack.c.h.b16 %v232
    %v820 = vunpack.c.l.b16 %v233
    %v821 = vunpack.c.h.b16 %v233
    %v822 = vunpack.c.l.b16 %v234
    %v823 = vunpack.c.h.b16 %v234
    %v824 = vunpack.c.l.b16 %v235
    %v825 = vunpack.c.h.b16 %v235
    %v826 = vunpack.c.l.b16 %v236
    %v827 = vunpack.c.h.b16 %v236
    %v828 = vunpack.c.l.b16 %v237
    %v829 = vunpack.c.h.b16 %v237
    %v830 = vunpack.c.l.b16 %v238
    %v831 = vunpack.c.h.b16 %v238
    %v832 = vunpack.c.l.b16 %v239
    %v833 = vunpack.c.h.b16 %v239
    %v834 = vunpack.c.l.b16 %v240
    %v835 = vunpack.c.h.b16 %v240
    %v836 = vunpack.c.l.b16 %v241
    %v837 = vunpack.c.h.b16 %v241
    %v838 = vunpack.c.l.b16 %v242
    %v839 = vunpack.c.h.b16 %v242
    %v840 = vunpack.c.l.b16 %v243
    %v841 = vunpack.c.h.b16 %v243
    %v842 = vpack.c.b16 %v454, %v450
    %v843 = vpack.c.b16 %v455, %v451
    %v844 = vpack.c.b16 %v456, %v452
    %v845 = vpack.c.b16 %v457, %v453
    %v846 = vpack.c.b16 %v462, %v458
    %v847 = vpack.c.b16 %v463, %v459
    %v848 = vpack.c.b16 %v464, %v460
    %v849 = vpack.c.b16 %v465, %v461
    %v850 = vpack.c.b16 %v470, %v466
    %v851 = vpack.c.b16 %v471, %v467
    %v852 = vpack.c.b16 %v472, %v468
    %v853 = vpack.c.b16 %v473, %v469
    %v854 = vpack.c.b16 %v478, %v474
    %v855 = vpack.c.b16 %v479, %v475
    %v856 = vpack.c.b16 %v480, %v476
    %v857 = vpack.c.b16 %v481, %v477
    %v858 = vpack.c.b16 %v486, %v482
    %v859 = vpack.c.b16 %v487, %v483
    %v860 = vpack.c.b16 %v488, %v484
    %v861 = vpack.c.b16 %v489, %v485
    %v862 = vpack.c.b16 %v494, %v490
    %v863 = vpack.c.b16 %v495, %v491
    %v864 = vpack.c.b16 %v496, %v492
    %v865 = vpack.c.b16 %v497, %v493
    %v866 = vpack.c.b16 %v502, %v498
    %v867 = vpack.c.b16 %v503, %v499
    %v868 = vpack.c.b16 %v504, %v500
    %v869 = vpack.c.b16 %v505, %v501
    %v870 = vpack.c.b16 %v510, %v506
    %v871 = vpack.c.b16 %v511, %v507
    %v872 = vpack.c.b16 %v512, %v508
    %v873 = vpack.c.b16 %v513, %v509
    %v874 = vpack.c.b16 %v518, %v514
    %v875 = vpack.c.b16 %v519, %v515
    %v876 = vpack.c.b16 %v520, %v516
    %v877 = vpack.c.b16 %v521, %v517
    %v878 = vpack.c.b16 %v526, %v522
    %v879 = vpack.c.b16 %v527, %v523
    %v880 = vpack.c.b16 %v528, %v524
    %v881 = vpack.c.b16 %v529, %v525
    %v882 = vpack.c.b16 %v534, %v530
    %v883 = vpack.c.b16 %v535, %v531
    %v884 = vpack.c.b16 %v536, %v532
    %v885 = vpack.c.b16 %v537, %v533
    %v886 = vpack.c.b16 %v542, %v538
    %v887 = vpack.c.b16 %v543, %v539
    %v888 = vpack.c.b16 %v544, %v540
    %v889 = vpack.c.b16 %v545, %v541
    %v890 = vpack.c.b16 %v550, %v546
    %v891 = vpack.c.b16 %v551, %v547
    %v892 = vpack.c.b16 %v552, %v548
    %v893 = vpack.c.b16 %v553, %v549
    %v894 = vpack.c.b16 %v558, %v554
    %v895 = vpack.c.b16 %v559, %v555
    %v896 = vpack.c.b16 %v560, %v556
    %v897 = vpack.c.b16 %v561, %v557
    %v898 = vpack.c.b16 %v566, %v562
    %v899 = vpack.c.b16 %v567, %v563
    %v900 = vpack.c.b16 %v568, %v564
    %v901 = vpack.c.b16 %v569, %v565
    %v902 = vpack.c.b16 %v574, %v570
    %v903 = vpack.c.b16 %v575, %v571
    %v904 = vpack.c.b16 %v576, %v572
    %v905 = vpack.c.b16 %v577, %v573
    %v906 = vpack.c.b16 %v582, %v578
    %v907 = vpack.c.b16 %v583, %v579
    %v908 = vpack.c.b16 %v584, %v580
    %v909 = vpack.c.b16 %v585, %v581
    %v910 = vpack.c.b16 %v590, %v586
    %v911 = vpack.c.b16 %v591, %v587
    %v912 = vpack.c.b16 %v592, %v588
    %v913 = vpack.c.b16 %v593, %v589
    %v914 = vpack.c.b16 %v598, %v594
    %v915 = vpack.c.b16 %v599, %v595
    %v916 = vpack.c.b16 %v600, %v596
    %v917 = vpack.c.b16 %v601, %v597
    %v918 = vpack.c.b16 %v606, %v602
    %v919 = vpack.c.b16 %v607, %v603
    %v920 = vpack.c.b16 %v608, %v604
    %v921 = vpack.c.b16 %v609, %v605
    %v922 = vpack.c.b16 %v614, %v610
    %v923 = vpack.c.b16 %v615, %v611
    %v924 = vpack.c.b16 %v616, %v612
    %v925 = vpack.c.b16 %v617, %v613
    %v926 = vpack.c.b16 %v622, %v618
    %v927 = vpack.c.b16 %v623, %v619
    %v928 = vpack.c.b16 %v624, %v620
    %v929 = vpack.c.b16 %v625, %v621
    %v930 = vpack.c.b16 %v630, %v626
    %v931 = vpack.c.b16 %v631, %v627
    %v932 = vpack.c.b16 %v632, %v628
    %v933 = vpack.c.b16 %v633, %v629
    %v934 = vpack.c.b16 %v638, %v634
    %v935 = vpack.c.b16 %v639, %v635
    %v936 = vpack.c.b16 %v640, %v636
    %v937 = vpack.c.b16 %v641, %v637
    %v938 = vpack.c.b16 %v646, %v642
    %v939 = vpack.c.b16 %v647, %v643
    %v940 = vpack.c.b16 %v648, %v644
    %v941 = vpack.c.b16 %v649, %v645
    %v942 = vpack.c.b16 %v654, %v650
    %v943 = vpack.c.b16 %v655, %v651
    %v944 = vpack.c.b16 %v656, %v652
    %v945 = vpack.c.b16 %v657, %v653
    %v946 = vpack.c.b16 %v662, %v658
    %v947 = vpack.c.b16 %v663, %v659
    %v948 = vpack.c.b16 %v664, %v660
    %v949 = vpack.c.b16 %v665, %v661
    %v950 = vpack.c.b16 %v670, %v666
    %v951 = vpack.c.b16 %v671, %v667
    %v952 = vpack.c.b16 %v672, %v668
    %v953 = vpack.c.b16 %v673, %v669
    %v954 = vpack.c.b16 %v678, %v674
    %v955 = vpack.c.b16 %v679, %v675
    %v956 = vpack.c.b16 %v680, %v676
    %v957 = vpack.c.b16 %v681, %v677
    %v958 = vpack.c.b16 %v686, %v682
    %v959 = vpack.c.b16 %v687, %v683
    %v960 = vpack.c.b16 %v688, %v684
    %v961 = vpack.c.b16 %v689, %v685
    %v962 = vpack.c.b16 %v694, %v690
    %v963 = vpack.c.b16 %v695, %v691
    %v964 = vpack.c.b16 %v696, %v692
    %v965 = vpack.c.b16 %v697, %v693
    %v966 = vpack.c.b16 %v702, %v698
    %v967 = vpack.c.b16 %v703, %v699
    %v968 = vpack.c.b16 %v704, %v700
    %v969 = vpack.c.b16 %v705, %v701
    %v970 = vpack.c.b16 %v710, %v706
    %v971 = vpack.c.b16 %v711, %v707
    %v972 = vpack.c.b16 %v712, %v708
    %v973 = vpack.c.b16 %v713, %v709
    %v974 = vpack.c.b16 %v718, %v714
    %v975 = vpack.c.b16 %v719, %v715
    %v976 = vpack.c.b16 %v720, %v716
    %v977 = vpack.c.b16 %v721, %v717
    %v978 = vpack.c.b16 %v726, %v722
    %v979 = vpack.c.b16 %v727, %v723
    %v980 = vpack.c.b16 %v728, %v724
    %v981 = vpack.c.b16 %v729, %v725
    %v982 = vpack.c.b16 %v734, %v730
    %v983 = vpack.c.b16 %v735, %v731
    %v984 = vpack.c.b16 %v736, %v732
    %v985 = vpack.c.b16 %v737, %v733
    %v986 = vpack.c.b16 %v742, %v738
    %v987 = vpack.c.b16 %v743, %v739
    %v988 = vpack.c.b16 %v744, %v740
    %v989 = vpack.c.b16 %v745, %v741
    %v990 = vpack.c.b16 %v750, %v746
    %v991 = vpack.c.b16 %v751, %v747
    %v992 = vpack.c.b16 %v752, %v748
    %v993 = vpack.c.b16 %v753, %v749
    %v994 = vpack.c.b16 %v758, %v754
    %v995 = vpack.c.b16 %v759, %v755
    %v996 = vpack.c.b16 %v760, %v756
    %v997 = vpack.c.b16 %v761, %v757
    %v998 = vpack.c.b16 %v766, %v762
    %v999 = vpack.c.b16 %v767, %v763
    %v1000 = vpack.c.b16 %v768, %v764
    %v1001 = vpack.c.b16 %v769, %v765
    %v1002 = vpack.c.b16 %v774, %v770
    %v1003 = vpack.c.b16 %v775, %v771
    %v1004 = vpack.c.b16 %v776, %v772
    %v1005 = vpack.c.b16 %v777, %v773
    %v1006 = vpack.c.b16 %v782, %v778
    %v1007 = vpack.c.b16 %v783, %v779
    %v1008 = vpack.c.b16 %v784, %v780
    %v1009 = vpack.c.b16 %v785, %v781
    %v1010 = vpack.c.b16 %v790, %v786
    %v1011 = vpack.c.b16 %v791, %v787
    %v1012 = vpack.c.b16 %v792, %v788
    %v1013 = vpack.c.b16 %v793, %v789
    %v1014 = vpack.c.b16 %v798, %v794
    %v1015 = vpack.c.b16 %v799, %v795
    %v1016 = vpack.c.b16 %v800, %v796
    %v1017 = vpack.c.b16 %v801, %v797
    %v1018 = vpack.c.b16 %v806, %v802
    %v1019 = vpack.c.b16 %v807, %v803
    %v1020 = vpack.c.b16 %v808, %v804
    %v1021 = vpack.c.b16 %v809, %v805
    %v1022 = vpack.c.b16 %v814, %v810
    %v1023 = vpack.c.b16 %v815, %v811
    %v1024 = vpack.c.b16 %v816, %v812
    %v1025 = vpack.c.b16 %v817, %v813
    %v1026 = vpack.c.b16 %v822, %v818
    %v1027 = vpack.c.b16 %v823, %v819
    %v1028 = vpack.c.b16 %v824, %v820
    %v1029 = vpack.c.b16 %v825, %v821
    %v1030 = vpack.c.b16 %v830, %v826
    %v1031 = vpack.c.b16 %v831, %v827
    %v1032 = vpack.c.b16 %v832, %v828
    %v1033 = vpack.c.b16 %v833, %v829
    %v1034 = vpack.c.b16 %v838, %v834
    %v1035 = vpack.c.b16 %v839, %v835
    %v1036 = vpack.c.b16 %v840, %v836
    %v1037 = vpack.c.b16 %v841, %v837
    %vm1234 = vcmask 130048
    %v1236 = vsel %vm1234, %v47, 0
    %1238 = vmatpush.bf16.msra.mxu0 %v870
    %1239 = vmatpush.bf16.msra.mxu0 %v866
    %1240 = vmatpush.bf16.msra.mxu0 %v862
    %1241 = vmatpush.bf16.msra.mxu0 %v858
    %1242 = vmatpush.bf16.msra.mxu0 %v854
    %1243 = vmatpush.bf16.msra.mxu0 %v850
    %1244 = vmatpush.bf16.msra.mxu0 %v846
    %1245 = vmatpush.bf16.msra.mxu0 %v842
    %1246 = vmatmul.bf16.gmra.mxu0 %v41
    %v1247 = vpop.f32.mrf.mxu0
    %v1248 = vadd.f32 %v246, %v1247
    %v1249 = vpop.f32.mrf.mxu0
    %1250 = vdwg.mxu0
    %1251 = vmatpush.bf16.msra.mxu0 %v902
    %1252 = vmatpush.bf16.msra.mxu0 %v898
    %1253 = vmatpush.bf16.msra.mxu0 %v894
    %1254 = vmatpush.bf16.msra.mxu0 %v890
    %1255 = vmatpush.bf16.msra.mxu0 %v886
    %1256 = vmatpush.bf16.msra.mxu0 %v882
    %1257 = vmatpush.bf16.msra.mxu0 %v878
    %1258 = vmatpush.bf16.msra.mxu0 %v874
    %1259 = vmatmul.bf16.gmra.mxu0 %v42
    %v1260 = vpop.f32.mrf.mxu0
    %v1261 = vadd.f32 %v1248, %v1260
    %v1262 = vpop.f32.mrf.mxu0
    %1263 = vdwg.mxu0
    %1264 = vmatpush.bf16.msra.mxu0 %v934
    %1265 = vmatpush.bf16.msra.mxu0 %v930
    %1266 = vmatpush.bf16.msra.mxu0 %v926
    %1267 = vmatpush.bf16.msra.mxu0 %v922
    %1268 = vmatpush.bf16.msra.mxu0 %v918
    %1269 = vmatpush.bf16.msra.mxu0 %v914
    %1270 = vmatpush.bf16.msra.mxu0 %v910
    %1271 = vmatpush.bf16.msra.mxu0 %v906
    %1272 = vmatmul.bf16.gmra.mxu0 %v43
    %v1273 = vpop.f32.mrf.mxu0
    %v1274 = vadd.f32 %v1261, %v1273
    %v1275 = vpop.f32.mrf.mxu0
    %1276 = vdwg.mxu0
    %1277 = vmatpush.bf16.msra.mxu0 %v966
    %1278 = vmatpush.bf16.msra.mxu0 %v962
    %1279 = vmatpush.bf16.msra.mxu0 %v958
    %1280 = vmatpush.bf16.msra.mxu0 %v954
    %1281 = vmatpush.bf16.msra.mxu0 %v950
    %1282 = vmatpush.bf16.msra.mxu0 %v946
    %1283 = vmatpush.bf16.msra.mxu0 %v942
    %1284 = vmatpush.bf16.msra.mxu0 %v938
    %1285 = vmatmul.bf16.gmra.mxu0 %v44
    %v1286 = vpop.f32.mrf.mxu0
    %v1287 = vadd.f32 %v1274, %v1286
    %v1288 = vpop.f32.mrf.mxu0
    %1289 = vdwg.mxu0
    %1290 = vmatpush.bf16.msra.mxu0 %v998
    %1291 = vmatpush.bf16.msra.mxu0 %v994
    %1292 = vmatpush.bf16.msra.mxu0 %v990
    %1293 = vmatpush.bf16.msra.mxu0 %v986
    %1294 = vmatpush.bf16.msra.mxu0 %v982
    %1295 = vmatpush.bf16.msra.mxu0 %v978
    %1296 = vmatpush.bf16.msra.mxu0 %v974
    %1297 = vmatpush.bf16.msra.mxu0 %v970
    %1298 = vmatmul.bf16.gmra.mxu0 %v45
    %v1299 = vpop.f32.mrf.mxu0
    %v1300 = vadd.f32 %v1287, %v1299
    %v1301 = vpop.f32.mrf.mxu0
    %1302 = vdwg.mxu0
    %1303 = vmatpush.bf16.msra.mxu0 %v1030
    %1304 = vmatpush.bf16.msra.mxu0 %v1026
    %1305 = vmatpush.bf16.msra.mxu0 %v1022
    %1306 = vmatpush.bf16.msra.mxu0 %v1018
    %1307 = vmatpush.bf16.msra.mxu0 %v1014
    %1308 = vmatpush.bf16.msra.mxu0 %v1010
    %1309 = vmatpush.bf16.msra.mxu0 %v1006
    %1310 = vmatpush.bf16.msra.mxu0 %v1002
    %1311 = vmatmul.bf16.gmra.mxu0 %v46
    %v1312 = vpop.f32.mrf.mxu0
    %v1313 = vadd.f32 %v1300, %v1312
    %v1314 = vpop.f32.mrf.mxu0
    %1315 = vdwg.mxu0
    %1316 = vmatpush.bf16.msra.mxu0 0
    %1317 = vmatpush.bf16.msra.mxu0 0
    %1318 = vmatpush.bf16.msra.mxu0 0
    %1319 = vmatpush.bf16.msra.mxu0 0
    %1320 = vmatpush.bf16.msra.mxu0 0
    %1321 = vmatpush.bf16.msra.mxu0 0
    %1322 = vmatpush.bf16.msra.mxu0 0
    %1323 = vmatpush.bf16.msra.mxu0 %v1034
    %1324 = vmatmul.bf16.gmra.mxu0 %v1236
    %v1325 = vpop.f32.mrf.mxu0
    %v1326 = vadd.f32 %v1313, %v1325
    %v1327 = vpop.f32.mrf.mxu0
    %1328 = vdwg.mxu0
    %1329 = vmatpush.bf16.msra.mxu0 %v871
    %1330 = vmatpush.bf16.msra.mxu0 %v867
    %1331 = vmatpush.bf16.msra.mxu0 %v863
    %1332 = vmatpush.bf16.msra.mxu0 %v859
    %1333 = vmatpush.bf16.msra.mxu0 %v855
    %1334 = vmatpush.bf16.msra.mxu0 %v851
    %1335 = vmatpush.bf16.msra.mxu0 %v847
    %1336 = vmatpush.bf16.msra.mxu0 %v843
    %1337 = vmatmul.bf16.gmra.mxu0 %v41
    %v1338 = vpop.f32.mrf.mxu0
    %v1339 = vadd.f32 %v247, %v1338
    %v1340 = vpop.f32.mrf.mxu0
    %1341 = vdwg.mxu0
    %1342 = vmatpush.bf16.msra.mxu0 %v903
    %1343 = vmatpush.bf16.msra.mxu0 %v899
    %1344 = vmatpush.bf16.msra.mxu0 %v895
    %1345 = vmatpush.bf16.msra.mxu0 %v891
    %1346 = vmatpush.bf16.msra.mxu0 %v887
    %1347 = vmatpush.bf16.msra.mxu0 %v883
    %1348 = vmatpush.bf16.msra.mxu0 %v879
    %1349 = vmatpush.bf16.msra.mxu0 %v875
    %1350 = vmatmul.bf16.gmra.mxu0 %v42
    %v1351 = vpop.f32.mrf.mxu0
    %v1352 = vadd.f32 %v1339, %v1351
    %v1353 = vpop.f32.mrf.mxu0
    %1354 = vdwg.mxu0
    %1355 = vmatpush.bf16.msra.mxu0 %v935
    %1356 = vmatpush.bf16.msra.mxu0 %v931
    %1357 = vmatpush.bf16.msra.mxu0 %v927
    %1358 = vmatpush.bf16.msra.mxu0 %v923
    %1359 = vmatpush.bf16.msra.mxu0 %v919
    %1360 = vmatpush.bf16.msra.mxu0 %v915
    %1361 = vmatpush.bf16.msra.mxu0 %v911
    %1362 = vmatpush.bf16.msra.mxu0 %v907
    %1363 = vmatmul.bf16.gmra.mxu0 %v43
    %v1364 = vpop.f32.mrf.mxu0
    %v1365 = vadd.f32 %v1352, %v1364
    %v1366 = vpop.f32.mrf.mxu0
    %1367 = vdwg.mxu0
    %1368 = vmatpush.bf16.msra.mxu0 %v967
    %1369 = vmatpush.bf16.msra.mxu0 %v963
    %1370 = vmatpush.bf16.msra.mxu0 %v959
    %1371 = vmatpush.bf16.msra.mxu0 %v955
    %1372 = vmatpush.bf16.msra.mxu0 %v951
    %1373 = vmatpush.bf16.msra.mxu0 %v947
    %1374 = vmatpush.bf16.msra.mxu0 %v943
    %1375 = vmatpush.bf16.msra.mxu0 %v939
    %1376 = vmatmul.bf16.gmra.mxu0 %v44
    %v1377 = vpop.f32.mrf.mxu0
    %v1378 = vadd.f32 %v1365, %v1377
    %v1379 = vpop.f32.mrf.mxu0
    %1380 = vdwg.mxu0
    %1381 = vmatpush.bf16.msra.mxu0 %v999
    %1382 = vmatpush.bf16.msra.mxu0 %v995
    %1383 = vmatpush.bf16.msra.mxu0 %v991
    %1384 = vmatpush.bf16.msra.mxu0 %v987
    %1385 = vmatpush.bf16.msra.mxu0 %v983
    %1386 = vmatpush.bf16.msra.mxu0 %v979
    %1387 = vmatpush.bf16.msra.mxu0 %v975
    %1388 = vmatpush.bf16.msra.mxu0 %v971
    %1389 = vmatmul.bf16.gmra.mxu0 %v45
    %v1390 = vpop.f32.mrf.mxu0
    %v1391 = vadd.f32 %v1378, %v1390
    %v1392 = vpop.f32.mrf.mxu0
    %1393 = vdwg.mxu0
    %1394 = vmatpush.bf16.msra.mxu0 %v1031
    %1395 = vmatpush.bf16.msra.mxu0 %v1027
    %1396 = vmatpush.bf16.msra.mxu0 %v1023
    %1397 = vmatpush.bf16.msra.mxu0 %v1019
    %1398 = vmatpush.bf16.msra.mxu0 %v1015
    %1399 = vmatpush.bf16.msra.mxu0 %v1011
    %1400 = vmatpush.bf16.msra.mxu0 %v1007
    %1401 = vmatpush.bf16.msra.mxu0 %v1003
    %1402 = vmatmul.bf16.gmra.mxu0 %v46
    %v1403 = vpop.f32.mrf.mxu0
    %v1404 = vadd.f32 %v1391, %v1403
    %v1405 = vpop.f32.mrf.mxu0
    %1406 = vdwg.mxu0
    %1407 = vmatpush.bf16.msra.mxu0 0
    %1408 = vmatpush.bf16.msra.mxu0 0
    %1409 = vmatpush.bf16.msra.mxu0 0
    %1410 = vmatpush.bf16.msra.mxu0 0
    %1411 = vmatpush.bf16.msra.mxu0 0
    %1412 = vmatpush.bf16.msra.mxu0 0
    %1413 = vmatpush.bf16.msra.mxu0 0
    %1414 = vmatpush.bf16.msra.mxu0 %v1035
    %1415 = vmatmul.bf16.gmra.mxu0 %v1236
    %v1416 = vpop.f32.mrf.mxu0
    %v1417 = vadd.f32 %v1404, %v1416
    %v1418 = vpop.f32.mrf.mxu0
    %1419 = vdwg.mxu0
    %1420 = vmatpush.bf16.msra.mxu0 %v872
    %1421 = vmatpush.bf16.msra.mxu0 %v868
    %1422 = vmatpush.bf16.msra.mxu0 %v864
    %1423 = vmatpush.bf16.msra.mxu0 %v860
    %1424 = vmatpush.bf16.msra.mxu0 %v856
    %1425 = vmatpush.bf16.msra.mxu0 %v852
    %1426 = vmatpush.bf16.msra.mxu0 %v848
    %1427 = vmatpush.bf16.msra.mxu0 %v844
    %1428 = vmatmul.bf16.gmra.mxu0 %v41
    %v1429 = vpop.f32.mrf.mxu0
    %v1430 = vadd.f32 %v248, %v1429
    %v1431 = vpop.f32.mrf.mxu0
    %1432 = vdwg.mxu0
    %1433 = vmatpush.bf16.msra.mxu0 %v904
    %1434 = vmatpush.bf16.msra.mxu0 %v900
    %1435 = vmatpush.bf16.msra.mxu0 %v896
    %1436 = vmatpush.bf16.msra.mxu0 %v892
    %1437 = vmatpush.bf16.msra.mxu0 %v888
    %1438 = vmatpush.bf16.msra.mxu0 %v884
    %1439 = vmatpush.bf16.msra.mxu0 %v880
    %1440 = vmatpush.bf16.msra.mxu0 %v876
    %1441 = vmatmul.bf16.gmra.mxu0 %v42
    %v1442 = vpop.f32.mrf.mxu0
    %v1443 = vadd.f32 %v1430, %v1442
    %v1444 = vpop.f32.mrf.mxu0
    %1445 = vdwg.mxu0
    %1446 = vmatpush.bf16.msra.mxu0 %v936
    %1447 = vmatpush.bf16.msra.mxu0 %v932
    %1448 = vmatpush.bf16.msra.mxu0 %v928
    %1449 = vmatpush.bf16.msra.mxu0 %v924
    %1450 = vmatpush.bf16.msra.mxu0 %v920
    %1451 = vmatpush.bf16.msra.mxu0 %v916
    %1452 = vmatpush.bf16.msra.mxu0 %v912
    %1453 = vmatpush.bf16.msra.mxu0 %v908
    %1454 = vmatmul.bf16.gmra.mxu0 %v43
    %v1455 = vpop.f32.mrf.mxu0
    %v1456 = vadd.f32 %v1443, %v1455
    %v1457 = vpop.f32.mrf.mxu0
    %1458 = vdwg.mxu0
    %1459 = vmatpush.bf16.msra.mxu0 %v968
    %1460 = vmatpush.bf16.msra.mxu0 %v964
    %1461 = vmatpush.bf16.msra.mxu0 %v960
    %1462 = vmatpush.bf16.msra.mxu0 %v956
    %1463 = vmatpush.bf16.msra.mxu0 %v952
    %1464 = vmatpush.bf16.msra.mxu0 %v948
    %1465 = vmatpush.bf16.msra.mxu0 %v944
    %1466 = vmatpush.bf16.msra.mxu0 %v940
    %1467 = vmatmul.bf16.gmra.mxu0 %v44
    %v1468 = vpop.f32.mrf.mxu0
    %v1469 = vadd.f32 %v1456, %v1468
    %v1470 = vpop.f32.mrf.mxu0
    %1471 = vdwg.mxu0
    %1472 = vmatpush.bf16.msra.mxu0 %v1000
    %1473 = vmatpush.bf16.msra.mxu0 %v996
    %1474 = vmatpush.bf16.msra.mxu0 %v992
    %1475 = vmatpush.bf16.msra.mxu0 %v988
    %1476 = vmatpush.bf16.msra.mxu0 %v984
    %1477 = vmatpush.bf16.msra.mxu0 %v980
    %1478 = vmatpush.bf16.msra.mxu0 %v976
    %1479 = vmatpush.bf16.msra.mxu0 %v972
    %1480 = vmatmul.bf16.gmra.mxu0 %v45
    %v1481 = vpop.f32.mrf.mxu0
    %v1482 = vadd.f32 %v1469, %v1481
    %v1483 = vpop.f32.mrf.mxu0
    %1484 = vdwg.mxu0
    %1485 = vmatpush.bf16.msra.mxu0 %v1032
    %1486 = vmatpush.bf16.msra.mxu0 %v1028
    %1487 = vmatpush.bf16.msra.mxu0 %v1024
    %1488 = vmatpush.bf16.msra.mxu0 %v1020
    %1489 = vmatpush.bf16.msra.mxu0 %v1016
    %1490 = vmatpush.bf16.msra.mxu0 %v1012
    %1491 = vmatpush.bf16.msra.mxu0 %v1008
    %1492 = vmatpush.bf16.msra.mxu0 %v1004
    %1493 = vmatmul.bf16.gmra.mxu0 %v46
    %v1494 = vpop.f32.mrf.mxu0
    %v1495 = vadd.f32 %v1482, %v1494
    %v1496 = vpop.f32.mrf.mxu0
    %1497 = vdwg.mxu0
    %1498 = vmatpush.bf16.msra.mxu0 0
    %1499 = vmatpush.bf16.msra.mxu0 0
    %1500 = vmatpush.bf16.msra.mxu0 0
    %1501 = vmatpush.bf16.msra.mxu0 0
    %1502 = vmatpush.bf16.msra.mxu0 0
    %1503 = vmatpush.bf16.msra.mxu0 0
    %1504 = vmatpush.bf16.msra.mxu0 0
    %1505 = vmatpush.bf16.msra.mxu0 %v1036
    %1506 = vmatmul.bf16.gmra.mxu0 %v1236
    %v1507 = vpop.f32.mrf.mxu0
    %v1508 = vadd.f32 %v1495, %v1507
    %v1509 = vpop.f32.mrf.mxu0
    %1510 = vdwg.mxu0
    %1511 = vmatpush.bf16.msra.mxu0 %v873
    %1512 = vmatpush.bf16.msra.mxu0 %v869
    %1513 = vmatpush.bf16.msra.mxu0 %v865
    %1514 = vmatpush.bf16.msra.mxu0 %v861
    %1515 = vmatpush.bf16.msra.mxu0 %v857
    %1516 = vmatpush.bf16.msra.mxu0 %v853
    %1517 = vmatpush.bf16.msra.mxu0 %v849
    %1518 = vmatpush.bf16.msra.mxu0 %v845
    %1519 = vmatmul.bf16.gmra.mxu0 %v41
    %v1520 = vpop.f32.mrf.mxu0
    %v1521 = vadd.f32 %v249, %v1520
    %v1522 = vpop.f32.mrf.mxu0
    %1523 = vdwg.mxu0
    %1524 = vmatpush.bf16.msra.mxu0 %v905
    %1525 = vmatpush.bf16.msra.mxu0 %v901
    %1526 = vmatpush.bf16.msra.mxu0 %v897
    %1527 = vmatpush.bf16.msra.mxu0 %v893
    %1528 = vmatpush.bf16.msra.mxu0 %v889
    %1529 = vmatpush.bf16.msra.mxu0 %v885
    %1530 = vmatpush.bf16.msra.mxu0 %v881
    %1531 = vmatpush.bf16.msra.mxu0 %v877
    %1532 = vmatmul.bf16.gmra.mxu0 %v42
    %v1533 = vpop.f32.mrf.mxu0
    %v1534 = vadd.f32 %v1521, %v1533
    %v1535 = vpop.f32.mrf.mxu0
    %1536 = vdwg.mxu0
    %1537 = vmatpush.bf16.msra.mxu0 %v937
    %1538 = vmatpush.bf16.msra.mxu0 %v933
    %1539 = vmatpush.bf16.msra.mxu0 %v929
    %1540 = vmatpush.bf16.msra.mxu0 %v925
    %1541 = vmatpush.bf16.msra.mxu0 %v921
    %1542 = vmatpush.bf16.msra.mxu0 %v917
    %1543 = vmatpush.bf16.msra.mxu0 %v913
    %1544 = vmatpush.bf16.msra.mxu0 %v909
    %1545 = vmatmul.bf16.gmra.mxu0 %v43
    %v1546 = vpop.f32.mrf.mxu0
    %v1547 = vadd.f32 %v1534, %v1546
    %v1548 = vpop.f32.mrf.mxu0
    %1549 = vdwg.mxu0
    %1550 = vmatpush.bf16.msra.mxu0 %v969
    %1551 = vmatpush.bf16.msra.mxu0 %v965
    %1552 = vmatpush.bf16.msra.mxu0 %v961
    %1553 = vmatpush.bf16.msra.mxu0 %v957
    %1554 = vmatpush.bf16.msra.mxu0 %v953
    %1555 = vmatpush.bf16.msra.mxu0 %v949
    %1556 = vmatpush.bf16.msra.mxu0 %v945
    %1557 = vmatpush.bf16.msra.mxu0 %v941
    %1558 = vmatmul.bf16.gmra.mxu0 %v44
    %v1559 = vpop.f32.mrf.mxu0
    %v1560 = vadd.f32 %v1547, %v1559
    %v1561 = vpop.f32.mrf.mxu0
    %1562 = vdwg.mxu0
    %1563 = vmatpush.bf16.msra.mxu0 %v1001
    %1564 = vmatpush.bf16.msra.mxu0 %v997
    %1565 = vmatpush.bf16.msra.mxu0 %v993
    %1566 = vmatpush.bf16.msra.mxu0 %v989
    %1567 = vmatpush.bf16.msra.mxu0 %v985
    %1568 = vmatpush.bf16.msra.mxu0 %v981
    %1569 = vmatpush.bf16.msra.mxu0 %v977
    %1570 = vmatpush.bf16.msra.mxu0 %v973
    %1571 = vmatmul.bf16.gmra.mxu0 %v45
    %v1572 = vpop.f32.mrf.mxu0
    %v1573 = vadd.f32 %v1560, %v1572
    %v1574 = vpop.f32.mrf.mxu0
    %1575 = vdwg.mxu0
    %1576 = vmatpush.bf16.msra.mxu0 %v1033
    %1577 = vmatpush.bf16.msra.mxu0 %v1029
    %1578 = vmatpush.bf16.msra.mxu0 %v1025
    %1579 = vmatpush.bf16.msra.mxu0 %v1021
    %1580 = vmatpush.bf16.msra.mxu0 %v1017
    %1581 = vmatpush.bf16.msra.mxu0 %v1013
    %1582 = vmatpush.bf16.msra.mxu0 %v1009
    %1583 = vmatpush.bf16.msra.mxu0 %v1005
    %1584 = vmatmul.bf16.gmra.mxu0 %v46
    %v1585 = vpop.f32.mrf.mxu0
    %v1586 = vadd.f32 %v1573, %v1585
    %v1587 = vpop.f32.mrf.mxu0
    %1588 = vdwg.mxu0
    %1589 = vmatpush.bf16.msra.mxu0 0
    %1590 = vmatpush.bf16.msra.mxu0 0
    %1591 = vmatpush.bf16.msra.mxu0 0
    %1592 = vmatpush.bf16.msra.mxu0 0
    %1593 = vmatpush.bf16.msra.mxu0 0
    %1594 = vmatpush.bf16.msra.mxu0 0
    %1595 = vmatpush.bf16.msra.mxu0 0
    %1596 = vmatpush.bf16.msra.mxu0 %v1037
    %1597 = vmatmul.bf16.gmra.mxu0 %v1236
    %v1598 = vpop.f32.mrf.mxu0
    %v1599 = vadd.f32 %v1586, %v1598
    %v1600 = vpop.f32.mrf.mxu0
    %1601 = vdwg.mxu0
    %v1602 = vmax.f32 %v1326, 0.0
    %v1603 = vmax.f32 %v1417, 0.0
    %v1604 = vmax.f32 %v1508, 0.0
    %v1605 = vmax.f32 %v1599, 0.0
    %v1606 = vpack.c.bf16 %v1602, %v1602
    %v1607 = vpack.c.bf16 %v1603, %v1603
    %v1608 = vpack.c.bf16 %v1604, %v1604
    %v1609 = vpack.c.bf16 %v1605, %v1605
    %v1610 = vld [vmem:[%s3] sm:$0xf]
    %v1611 = vld [vmem:[%s3 + $0x4] sm:$0xf]
    %v1612 = vld [vmem:[%s3 + $0x8] sm:$0xf]
    %v1613 = vld [vmem:[%s3 + $0xc] sm:$0xf]
    %v1614 = vld [vmem:[%s3 + $0x10] sm:$0xf]
    %v1615 = vld [vmem:[%s3 + $0x14] sm:$0xf]
    %v1616 = vld [vmem:[%s3 + $0x18] sm:$0xf]
    %v1617 = vld [vmem:[%s3 + $0x1c] sm:$0xf]
    %v1618 = vld [vmem:[%s3 + $0x20] sm:$0xf]
    %v1619 = vld [vmem:[%s3 + $0x24] sm:$0xf]
    %v1620 = vld [vmem:[%s3 + $0x28] sm:$0xf]
    %v1621 = vld [vmem:[%s3 + $0x2c] sm:$0xf]
    %v1622 = vld [vmem:[%s3 + $0x30] sm:$0xf]
    %v1623 = vld [vmem:[%s3 + $0x34] sm:$0xf]
    %v1624 = vld [vmem:[%s3 + $0x38] sm:$0xf]
    %v1625 = vld [vmem:[%s3 + $0x3c] sm:$0xf]
    %v1626 = vld [vmem:[%s3 + $0x40] sm:$0xf]
    %v1627 = vld [vmem:[%s3 + $0x44] sm:$0xf]
    %v1628 = vld [vmem:[%s3 + $0x48] sm:$0xf]
    %v1629 = vld [vmem:[%s3 + $0x4c] sm:$0xf]
    %v1630 = vld [vmem:[%s3 + $0x50] sm:$0xf]
    %v1631 = vld [vmem:[%s3 + $0x54] sm:$0xf]
    %v1632 = vld [vmem:[%s3 + $0x58] sm:$0xf]
    %v1633 = vld [vmem:[%s3 + $0x5c] sm:$0xf]
    %v1634 = vld [vmem:[%s3 + $0x60] sm:$0xf]
    %v1635 = vld [vmem:[%s3 + $0x64] sm:$0xf]
    %v1636 = vld [vmem:[%s3 + $0x68] sm:$0xf]
    %v1637 = vld [vmem:[%s3 + $0x6c] sm:$0xf]
    %v1638 = vld [vmem:[%s3 + $0x70] sm:$0xf]
    %v1639 = vld [vmem:[%s3 + $0x74] sm:$0xf]
    %v1640 = vld [vmem:[%s3 + $0x78] sm:$0xf]
    %v1641 = vld [vmem:[%s3 + $0x7c] sm:$0xf]
    %v1642 = vld [vmem:[%s3 + $0x80] sm:$0xf]
    %v1643 = vld [vmem:[%s3 + $0x84] sm:$0xf]
    %v1644 = vld [vmem:[%s3 + $0x88] sm:$0xf]
    %v1645 = vld [vmem:[%s3 + $0x8c] sm:$0xf]
    %v1646 = vld [vmem:[%s3 + $0x90] sm:$0xf]
    %v1647 = vld [vmem:[%s3 + $0x94] sm:$0xf]
    %v1648 = vld [vmem:[%s3 + $0x98] sm:$0xf]
    %v1649 = vld [vmem:[%s3 + $0x9c] sm:$0xf]
    %v1650 = vld [vmem:[%s3 + $0xa0] sm:$0xf]
    %v1651 = vld [vmem:[%s3 + $0xa4] sm:$0xf]
    %v1652 = vld [vmem:[%s3 + $0xa8] sm:$0xf]
    %v1653 = vld [vmem:[%s3 + $0xac] sm:$0xf]
    %v1654 = vld [vmem:[%s3 + $0xb0] sm:$0xf]
    %v1655 = vld [vmem:[%s3 + $0xb4] sm:$0xf]
    %v1656 = vld [vmem:[%s3 + $0xb8] sm:$0xf]
    %v1657 = vld [vmem:[%s3 + $0xbc] sm:$0xf]
    %v1658 = vld [vmem:[%s3 + $0xc0] sm:$0xf]
    %v1659 = vld [vmem:[%s4] sm:$0x1]
    %v1661 = vperm.slane %v1659, 0
    %v1712 = vunpack.c.l.b16 %v1610
    %v1713 = vunpack.c.l.b16 %v1611
    %v1714 = vunpack.c.l.b16 %v1612
    %v1715 = vunpack.c.l.b16 %v1613
    %v1716 = vunpack.c.l.b16 %v1614
    %v1717 = vunpack.c.l.b16 %v1615
    %v1718 = vunpack.c.l.b16 %v1616
    %v1719 = vunpack.c.l.b16 %v1617
    %v1720 = vunpack.c.l.b16 %v1618
    %v1721 = vunpack.c.l.b16 %v1619
    %v1722 = vunpack.c.l.b16 %v1620
    %v1723 = vunpack.c.l.b16 %v1621
    %v1724 = vunpack.c.l.b16 %v1622
    %v1725 = vunpack.c.l.b16 %v1623
    %v1726 = vunpack.c.l.b16 %v1624
    %v1727 = vunpack.c.l.b16 %v1625
    %v1728 = vunpack.c.l.b16 %v1626
    %v1729 = vunpack.c.l.b16 %v1627
    %v1730 = vunpack.c.l.b16 %v1628
    %v1731 = vunpack.c.l.b16 %v1629
    %v1732 = vunpack.c.l.b16 %v1630
    %v1733 = vunpack.c.l.b16 %v1631
    %v1734 = vunpack.c.l.b16 %v1632
    %v1735 = vunpack.c.l.b16 %v1633
    %v1736 = vunpack.c.l.b16 %v1634
    %v1737 = vunpack.c.l.b16 %v1635
    %v1738 = vunpack.c.l.b16 %v1636
    %v1739 = vunpack.c.l.b16 %v1637
    %v1740 = vunpack.c.l.b16 %v1638
    %v1741 = vunpack.c.l.b16 %v1639
    %v1742 = vunpack.c.l.b16 %v1640
    %v1743 = vunpack.c.l.b16 %v1641
    %v1744 = vunpack.c.l.b16 %v1642
    %v1745 = vunpack.c.l.b16 %v1643
    %v1746 = vunpack.c.l.b16 %v1644
    %v1747 = vunpack.c.l.b16 %v1645
    %v1748 = vunpack.c.l.b16 %v1646
    %v1749 = vunpack.c.l.b16 %v1647
    %v1750 = vunpack.c.l.b16 %v1648
    %v1751 = vunpack.c.l.b16 %v1649
    %v1752 = vunpack.c.l.b16 %v1650
    %v1753 = vunpack.c.l.b16 %v1651
    %v1754 = vunpack.c.l.b16 %v1652
    %v1755 = vunpack.c.l.b16 %v1653
    %v1756 = vunpack.c.l.b16 %v1654
    %v1757 = vunpack.c.l.b16 %v1655
    %v1758 = vunpack.c.l.b16 %v1656
    %v1759 = vunpack.c.l.b16 %v1657
    %v1760 = vunpack.c.l.b16 %v1658
    %v1761 = vpack.c.b16 %v1713, %v1712
    %v1762 = vpack.c.b16 %v1715, %v1714
    %v1763 = vpack.c.b16 %v1717, %v1716
    %v1764 = vpack.c.b16 %v1719, %v1718
    %v1765 = vpack.c.b16 %v1721, %v1720
    %v1766 = vpack.c.b16 %v1723, %v1722
    %v1767 = vpack.c.b16 %v1725, %v1724
    %v1768 = vpack.c.b16 %v1727, %v1726
    %v1769 = vpack.c.b16 %v1729, %v1728
    %v1770 = vpack.c.b16 %v1731, %v1730
    %v1771 = vpack.c.b16 %v1733, %v1732
    %v1772 = vpack.c.b16 %v1735, %v1734
    %v1773 = vpack.c.b16 %v1737, %v1736
    %v1774 = vpack.c.b16 %v1739, %v1738
    %v1775 = vpack.c.b16 %v1741, %v1740
    %v1776 = vpack.c.b16 %v1743, %v1742
    %v1777 = vpack.c.b16 %v1745, %v1744
    %v1778 = vpack.c.b16 %v1747, %v1746
    %v1779 = vpack.c.b16 %v1749, %v1748
    %v1780 = vpack.c.b16 %v1751, %v1750
    %v1781 = vpack.c.b16 %v1753, %v1752
    %v1782 = vpack.c.b16 %v1755, %v1754
    %v1783 = vpack.c.b16 %v1757, %v1756
    %v1784 = vpack.c.b16 %v1759, %v1758
    %v1785 = vpack.c.b16 %v1760, %v1760
    %vm1810 = vcmask 64512
    %v1812 = vsel %vm1810, %v1609, 0
    %vm1814 = vcmask 1043456
    %v1816 = vsel %vm1814, %v1785, 0
    %1818 = vmatpush.bf16.msra.mxu0 %v1768
    %1819 = vmatpush.bf16.msra.mxu0 %v1767
    %1820 = vmatpush.bf16.msra.mxu0 %v1766
    %1821 = vmatpush.bf16.msra.mxu0 %v1765
    %1822 = vmatpush.bf16.msra.mxu0 %v1764
    %1823 = vmatpush.bf16.msra.mxu0 %v1763
    %1824 = vmatpush.bf16.msra.mxu0 %v1762
    %1825 = vmatpush.bf16.msra.mxu0 %v1761
    %1826 = vmatmul.bf16.gmra.mxu0 %v1606
    %v1827 = vpop.f32.mrf.mxu0
    %v1828 = vadd.f32 %v1661, %v1827
    %v1829 = vpop.f32.mrf.mxu0
    %1830 = vdwg.mxu0
    %1831 = vmatpush.bf16.msra.mxu0 %v1776
    %1832 = vmatpush.bf16.msra.mxu0 %v1775
    %1833 = vmatpush.bf16.msra.mxu0 %v1774
    %1834 = vmatpush.bf16.msra.mxu0 %v1773
    %1835 = vmatpush.bf16.msra.mxu0 %v1772
    %1836 = vmatpush.bf16.msra.mxu0 %v1771
    %1837 = vmatpush.bf16.msra.mxu0 %v1770
    %1838 = vmatpush.bf16.msra.mxu0 %v1769
    %1839 = vmatmul.bf16.gmra.mxu0 %v1607
    %v1840 = vpop.f32.mrf.mxu0
    %v1841 = vadd.f32 %v1828, %v1840
    %v1842 = vpop.f32.mrf.mxu0
    %1843 = vdwg.mxu0
    %1844 = vmatpush.bf16.msra.mxu0 %v1784
    %1845 = vmatpush.bf16.msra.mxu0 %v1783
    %1846 = vmatpush.bf16.msra.mxu0 %v1782
    %1847 = vmatpush.bf16.msra.mxu0 %v1781
    %1848 = vmatpush.bf16.msra.mxu0 %v1780
    %1849 = vmatpush.bf16.msra.mxu0 %v1779
    %1850 = vmatpush.bf16.msra.mxu0 %v1778
    %1851 = vmatpush.bf16.msra.mxu0 %v1777
    %1852 = vmatmul.bf16.gmra.mxu0 %v1608
    %v1853 = vpop.f32.mrf.mxu0
    %v1854 = vadd.f32 %v1841, %v1853
    %v1855 = vpop.f32.mrf.mxu0
    %1856 = vdwg.mxu0
    %1857 = vmatpush.bf16.msra.mxu0 0
    %1858 = vmatpush.bf16.msra.mxu0 0
    %1859 = vmatpush.bf16.msra.mxu0 0
    %1860 = vmatpush.bf16.msra.mxu0 0
    %1861 = vmatpush.bf16.msra.mxu0 0
    %1862 = vmatpush.bf16.msra.mxu0 0
    %1863 = vmatpush.bf16.msra.mxu0 0
    %1864 = vmatpush.bf16.msra.mxu0 %v1816
    %1865 = vmatmul.bf16.gmra.mxu0 %v1812
    %v1866 = vpop.f32.mrf.mxu0
    %v1867 = vadd.f32 %v1854, %v1866
    %v1868 = vpop.f32.mrf.mxu0
    %1869 = vdwg.mxu0
    %v1870 = vmax.f32 %v1867, 0.0
    %v1871 = vpack.c.bf16 %v1870, %v1870
    %v1872 = vld [vmem:[%s5] sm:$0xff]
    %v1873 = vld [vmem:[%s5 + $0x8] sm:$0xff]
    %v1874 = vld [vmem:[%s6] sm:$0xf]
    %v1876 = vperm.slane %v1874, 0
    %v1877 = vperm.slane %v1874, 1
    %v1878 = vperm.slane %v1874, 2
    %v1879 = vperm.slane %v1874, 3
    %v1886 = vunpack.c.l.b16 %v1872
    %v1887 = vunpack.c.h.b16 %v1872
    %v1888 = vunpack.c.l.b16 %v1873
    %v1889 = vunpack.c.h.b16 %v1873
    %v1890 = vpack.c.b16 %v1886, %v1886
    %v1891 = vpack.c.b16 %v1887, %v1887
    %v1892 = vpack.c.b16 %v1888, %v1888
    %v1893 = vpack.c.b16 %v1889, %v1889
    %v1895 = vsel %vm1810, %v1871, 0
    %v1898 = vsel %vm1814, %v1890, 0
    %v1901 = vsel %vm1814, %v1891, 0
    %v1904 = vsel %vm1814, %v1892, 0
    %v1907 = vsel %vm1814, %v1893, 0
    %1909 = vmatpush.bf16.msra.mxu0 0
    %1910 = vmatpush.bf16.msra.mxu0 0
    %1911 = vmatpush.bf16.msra.mxu0 0
    %1912 = vmatpush.bf16.msra.mxu0 0
    %1913 = vmatpush.bf16.msra.mxu0 0
    %1914 = vmatpush.bf16.msra.mxu0 0
    %1915 = vmatpush.bf16.msra.mxu0 0
    %1916 = vmatpush.bf16.msra.mxu0 %v1898
    %1917 = vmatmul.bf16.gmra.mxu0 %v1895
    %v1918 = vpop.f32.mrf.mxu0
    %v1919 = vadd.f32 %v1876, %v1918
    %v1920 = vpop.f32.mrf.mxu0
    %1921 = vdwg.mxu0
    %1922 = vmatpush.bf16.msra.mxu0 0
    %1923 = vmatpush.bf16.msra.mxu0 0
    %1924 = vmatpush.bf16.msra.mxu0 0
    %1925 = vmatpush.bf16.msra.mxu0 0
    %1926 = vmatpush.bf16.msra.mxu0 0
    %1927 = vmatpush.bf16.msra.mxu0 0
    %1928 = vmatpush.bf16.msra.mxu0 0
    %1929 = vmatpush.bf16.msra.mxu0 %v1901
    %1930 = vmatmul.bf16.gmra.mxu0 %v1895
    %v1931 = vpop.f32.mrf.mxu0
    %v1932 = vadd.f32 %v1877, %v1931
    %v1933 = vpop.f32.mrf.mxu0
    %1934 = vdwg.mxu0
    %1935 = vmatpush.bf16.msra.mxu0 0
    %1936 = vmatpush.bf16.msra.mxu0 0
    %1937 = vmatpush.bf16.msra.mxu0 0
    %1938 = vmatpush.bf16.msra.mxu0 0
    %1939 = vmatpush.bf16.msra.mxu0 0
    %1940 = vmatpush.bf16.msra.mxu0 0
    %1941 = vmatpush.bf16.msra.mxu0 0
    %1942 = vmatpush.bf16.msra.mxu0 %v1904
    %1943 = vmatmul.bf16.gmra.mxu0 %v1895
    %v1944 = vpop.f32.mrf.mxu0
    %v1945 = vadd.f32 %v1878, %v1944
    %v1946 = vpop.f32.mrf.mxu0
    %1947 = vdwg.mxu0
    %1948 = vmatpush.bf16.msra.mxu0 0
    %1949 = vmatpush.bf16.msra.mxu0 0
    %1950 = vmatpush.bf16.msra.mxu0 0
    %1951 = vmatpush.bf16.msra.mxu0 0
    %1952 = vmatpush.bf16.msra.mxu0 0
    %1953 = vmatpush.bf16.msra.mxu0 0
    %1954 = vmatpush.bf16.msra.mxu0 0
    %1955 = vmatpush.bf16.msra.mxu0 %v1907
    %1956 = vmatmul.bf16.gmra.mxu0 %v1895
    %v1957 = vpop.f32.mrf.mxu0
    %v1958 = vadd.f32 %v1879, %v1957
    %v1959 = vpop.f32.mrf.mxu0
    %1960 = vdwg.mxu0
    %v1961 = vmax.f32 %v1919, 0.0
    %v1962 = vmax.f32 %v1932, 0.0
    %v1963 = vmax.f32 %v1945, 0.0
    %v1964 = vmax.f32 %v1958, 0.0
    %v1965 = vpack.c.bf16 %v1961, %v1961
    %v1966 = vpack.c.bf16 %v1962, %v1962
    %v1967 = vpack.c.bf16 %v1963, %v1963
    %v1968 = vpack.c.bf16 %v1964, %v1964
    %v1969 = vld [vmem:[%s7] sm:$0xff]
    %v1970 = vld [vmem:[%s7 + $0x8] sm:$0xff]
    %v1971 = vld [vmem:[%s7 + $0x10] sm:$0xff]
    %v1972 = vld [vmem:[%s7 + $0x18] sm:$0xf]
    %v1973 = vld [vmem:[%s7 + $0x1c] sm:$0xff]
    %v1974 = vld [vmem:[%s7 + $0x24] sm:$0xff]
    %v1975 = vld [vmem:[%s7 + $0x2c] sm:$0xff]
    %v1976 = vld [vmem:[%s7 + $0x34] sm:$0xf]
    %v1977 = vld [vmem:[%s7 + $0x38] sm:$0xff]
    %v1978 = vld [vmem:[%s7 + $0x40] sm:$0xff]
    %v1979 = vld [vmem:[%s7 + $0x48] sm:$0xff]
    %v1980 = vld [vmem:[%s7 + $0x50] sm:$0xf]
    %v1981 = vld [vmem:[%s7 + $0x54] sm:$0xff]
    %v1982 = vld [vmem:[%s7 + $0x5c] sm:$0xff]
    %v1983 = vld [vmem:[%s7 + $0x64] sm:$0xff]
    %v1984 = vld [vmem:[%s7 + $0x6c] sm:$0xf]
    %v1985 = vld [vmem:[%s7 + $0x70] sm:$0xff]
    %v1986 = vld [vmem:[%s7 + $0x78] sm:$0xff]
    %v1987 = vld [vmem:[%s7 + $0x80] sm:$0xff]
    %v1988 = vld [vmem:[%s7 + $0x88] sm:$0xf]
    %v1989 = vld [vmem:[%s7 + $0x8c] sm:$0xff]
    %v1990 = vld [vmem:[%s7 + $0x94] sm:$0xff]
    %v1991 = vld [vmem:[%s7 + $0x9c] sm:$0xff]
    %v1992 = vld [vmem:[%s7 + $0xa4] sm:$0xf]
    %v1993 = vld [vmem:[%s7 + $0xa8] sm:$0xff]
    %v1994 = vld [vmem:[%s7 + $0xb0] sm:$0xff]
    %v1995 = vld [vmem:[%s7 + $0xb8] sm:$0xff]
    %v1996 = vld [vmem:[%s7 + $0xc0] sm:$0xf]
    %v1997 = vld [vmem:[%s7 + $0xc4] sm:$0xff]
    %v1998 = vld [vmem:[%s7 + $0xcc] sm:$0xff]
    %v1999 = vld [vmem:[%s7 + $0xd4] sm:$0xff]
    %v2000 = vld [vmem:[%s7 + $0xdc] sm:$0xf]
    %v2001 = vld [vmem:[%s7 + $0xe0] sm:$0xff]
    %v2002 = vld [vmem:[%s7 + $0xe8] sm:$0xff]
    %v2003 = vld [vmem:[%s7 + $0xf0] sm:$0xff]
    %v2004 = vld [vmem:[%s7 + $0xf8] sm:$0xf]
    %v2005 = vld [vmem:[%s7 + $0xfc] sm:$0xff]
    %v2006 = vld [vmem:[%s7 + $0x104] sm:$0xff]
    %v2007 = vld [vmem:[%s7 + $0x10c] sm:$0xff]
    %v2008 = vld [vmem:[%s7 + $0x114] sm:$0xf]
    %v2009 = vld [vmem:[%s7 + $0x118] sm:$0xff]
    %v2010 = vld [vmem:[%s7 + $0x120] sm:$0xff]
    %v2011 = vld [vmem:[%s7 + $0x128] sm:$0xff]
    %v2012 = vld [vmem:[%s7 + $0x130] sm:$0xf]
    %v2013 = vld [vmem:[%s7 + $0x134] sm:$0xff]
    %v2014 = vld [vmem:[%s7 + $0x13c] sm:$0xff]
    %v2015 = vld [vmem:[%s7 + $0x144] sm:$0xff]
    %v2016 = vld [vmem:[%s7 + $0x14c] sm:$0xf]
    %v2017 = vld [vmem:[%s7 + $0x150] sm:$0xff]
    %v2018 = vld [vmem:[%s7 + $0x158] sm:$0xff]
    %v2019 = vld [vmem:[%s7 + $0x160] sm:$0xff]
    %v2020 = vld [vmem:[%s7 + $0x168] sm:$0xf]
    %v2021 = vld [vmem:[%s7 + $0x16c] sm:$0xff]
    %v2022 = vld [vmem:[%s7 + $0x174] sm:$0xff]
    %v2023 = vld [vmem:[%s7 + $0x17c] sm:$0xff]
    %v2024 = vld [vmem:[%s7 + $0x184] sm:$0xf]
    %v2025 = vld [vmem:[%s7 + $0x188] sm:$0xff]
    %v2026 = vld [vmem:[%s7 + $0x190] sm:$0xff]
    %v2027 = vld [vmem:[%s7 + $0x198] sm:$0xff]
    %v2028 = vld [vmem:[%s7 + $0x1a0] sm:$0xf]
    %v2029 = vld [vmem:[%s7 + $0x1a4] sm:$0xff]
    %v2030 = vld [vmem:[%s7 + $0x1ac] sm:$0xff]
    %v2031 = vld [vmem:[%s7 + $0x1b4] sm:$0xff]
    %v2032 = vld [vmem:[%s7 + $0x1bc] sm:$0xf]
    %v2033 = vld [vmem:[%s7 + $0x1c0] sm:$0xff]
    %v2034 = vld [vmem:[%s7 + $0x1c8] sm:$0xff]
    %v2035 = vld [vmem:[%s7 + $0x1d0] sm:$0xff]
    %v2036 = vld [vmem:[%s7 + $0x1d8] sm:$0xf]
    %v2037 = vld [vmem:[%s7 + $0x1dc] sm:$0xff]
    %v2038 = vld [vmem:[%s7 + $0x1e4] sm:$0xff]
    %v2039 = vld [vmem:[%s7 + $0x1ec] sm:$0xff]
    %v2040 = vld [vmem:[%s7 + $0x1f4] sm:$0xf]
    %v2041 = vld [vmem:[%s7 + $0x1f8] sm:$0xff]
    %v2042 = vld [vmem:[%s7 + $0x200] sm:$0xff]
    %v2043 = vld [vmem:[%s7 + $0x208] sm:$0xff]
    %v2044 = vld [vmem:[%s7 + $0x210] sm:$0xf]
    %v2045 = vld [vmem:[%s7 + $0x214] sm:$0xff]
    %v2046 = vld [vmem:[%s7 + $0x21c] sm:$0xff]
    %v2047 = vld [vmem:[%s7 + $0x224] sm:$0xff]
    %v2048 = vld [vmem:[%s7 + $0x22c] sm:$0xf]
    %v2049 = vld [vmem:[%s7 + $0x230] sm:$0xff]
    %v2050 = vld [vmem:[%s7 + $0x238] sm:$0xff]
    %v2051 = vld [vmem:[%s7 + $0x240] sm:$0xff]
    %v2052 = vld [vmem:[%s7 + $0x248] sm:$0xf]
    %v2053 = vld [vmem:[%s7 + $0x24c] sm:$0xff]
    %v2054 = vld [vmem:[%s7 + $0x254] sm:$0xff]
    %v2055 = vld [vmem:[%s7 + $0x25c] sm:$0xff]
    %v2056 = vld [vmem:[%s7 + $0x264] sm:$0xf]
    %v2057 = vld [vmem:[%s7 + $0x268] sm:$0xff]
    %v2058 = vld [vmem:[%s7 + $0x270] sm:$0xff]
    %v2059 = vld [vmem:[%s7 + $0x278] sm:$0xff]
    %v2060 = vld [vmem:[%s7 + $0x280] sm:$0xf]
    %v2061 = vld [vmem:[%s7 + $0x284] sm:$0xff]
    %v2062 = vld [vmem:[%s7 + $0x28c] sm:$0xff]
    %v2063 = vld [vmem:[%s7 + $0x294] sm:$0xff]
    %v2064 = vld [vmem:[%s7 + $0x29c] sm:$0xf]
    %v2065 = vld [vmem:[%s7 + $0x2a0] sm:$0xff]
    %v2066 = vld [vmem:[%s7 + $0x2a8] sm:$0xff]
    %v2067 = vld [vmem:[%s7 + $0x2b0] sm:$0xff]
    %v2068 = vld [vmem:[%s7 + $0x2b8] sm:$0xf]
    %v2069 = vld [vmem:[%s7 + $0x2bc] sm:$0xff]
    %v2070 = vld [vmem:[%s7 + $0x2c4] sm:$0xff]
    %v2071 = vld [vmem:[%s7 + $0x2cc] sm:$0xff]
    %v2072 = vld [vmem:[%s7 + $0x2d4] sm:$0xf]
    %v2073 = vld [vmem:[%s7 + $0x2d8] sm:$0xff]
    %v2074 = vld [vmem:[%s7 + $0x2e0] sm:$0xff]
    %v2075 = vld [vmem:[%s7 + $0x2e8] sm:$0xff]
    %v2076 = vld [vmem:[%s7 + $0x2f0] sm:$0xf]
    %v2077 = vld [vmem:[%s7 + $0x2f4] sm:$0xff]
    %v2078 = vld [vmem:[%s7 + $0x2fc] sm:$0xff]
    %v2079 = vld [vmem:[%s7 + $0x304] sm:$0xff]
    %v2080 = vld [vmem:[%s7 + $0x30c] sm:$0xf]
    %v2081 = vld [vmem:[%s7 + $0x310] sm:$0xff]
    %v2082 = vld [vmem:[%s7 + $0x318] sm:$0xff]
    %v2083 = vld [vmem:[%s7 + $0x320] sm:$0xff]
    %v2084 = vld [vmem:[%s7 + $0x328] sm:$0xf]
    %v2085 = vld [vmem:[%s7 + $0x32c] sm:$0xff]
    %v2086 = vld [vmem:[%s7 + $0x334] sm:$0xff]
    %v2087 = vld [vmem:[%s7 + $0x33c] sm:$0xff]
    %v2088 = vld [vmem:[%s7 + $0x344] sm:$0xf]
    %v2089 = vld [vmem:[%s7 + $0x348] sm:$0xff]
    %v2090 = vld [vmem:[%s7 + $0x350] sm:$0xff]
    %v2091 = vld [vmem:[%s7 + $0x358] sm:$0xff]
    %v2092 = vld [vmem:[%s7 + $0x360] sm:$0xf]
    %v2093 = vld [vmem:[%s7 + $0x364] sm:$0xff]
    %v2094 = vld [vmem:[%s7 + $0x36c] sm:$0xff]
    %v2095 = vld [vmem:[%s7 + $0x374] sm:$0xff]
    %v2096 = vld [vmem:[%s7 + $0x37c] sm:$0xf]
    %v2097 = vld [vmem:[%s7 + $0x380] sm:$0xff]
    %v2098 = vld [vmem:[%s7 + $0x388] sm:$0xff]
    %v2099 = vld [vmem:[%s7 + $0x390] sm:$0xff]
    %v2100 = vld [vmem:[%s7 + $0x398] sm:$0xf]
    %v2101 = vld [vmem:[%s7 + $0x39c] sm:$0xff]
    %v2102 = vld [vmem:[%s7 + $0x3a4] sm:$0xff]
    %v2103 = vld [vmem:[%s7 + $0x3ac] sm:$0xff]
    %v2104 = vld [vmem:[%s7 + $0x3b4] sm:$0xf]
    %v2105 = vld [vmem:[%s7 + $0x3b8] sm:$0xff]
    %v2106 = vld [vmem:[%s7 + $0x3c0] sm:$0xff]
    %v2107 = vld [vmem:[%s7 + $0x3c8] sm:$0xff]
    %v2108 = vld [vmem:[%s7 + $0x3d0] sm:$0xf]
    %v2109 = vld [vmem:[%s7 + $0x3d4] sm:$0xff]
    %v2110 = vld [vmem:[%s7 + $0x3dc] sm:$0xff]
    %v2111 = vld [vmem:[%s7 + $0x3e4] sm:$0xff]
    %v2112 = vld [vmem:[%s7 + $0x3ec] sm:$0xf]
    %v2113 = vld [vmem:[%s7 + $0x3f0] sm:$0xff]
    %v2114 = vld [vmem:[%s7 + $0x3f8] sm:$0xff]
    %v2115 = vld [vmem:[%s7 + $0x400] sm:$0xff]
    %v2116 = vld [vmem:[%s7 + $0x408] sm:$0xf]
    %v2117 = vld [vmem:[%s7 + $0x40c] sm:$0xff]
    %v2118 = vld [vmem:[%s7 + $0x414] sm:$0xff]
    %v2119 = vld [vmem:[%s7 + $0x41c] sm:$0xff]
    %v2120 = vld [vmem:[%s7 + $0x424] sm:$0xf]
    %v2121 = vld [vmem:[%s7 + $0x428] sm:$0xff]
    %v2122 = vld [vmem:[%s7 + $0x430] sm:$0xff]
    %v2123 = vld [vmem:[%s7 + $0x438] sm:$0xff]
    %v2124 = vld [vmem:[%s7 + $0x440] sm:$0xf]
    %v2125 = vld [vmem:[%s7 + $0x444] sm:$0xff]
    %v2126 = vld [vmem:[%s7 + $0x44c] sm:$0xff]
    %v2127 = vld [vmem:[%s7 + $0x454] sm:$0xff]
    %v2128 = vld [vmem:[%s7 + $0x45c] sm:$0xf]
    %v2129 = vld [vmem:[%s7 + $0x460] sm:$0xff]
    %v2130 = vld [vmem:[%s7 + $0x468] sm:$0xff]
    %v2131 = vld [vmem:[%s7 + $0x470] sm:$0xff]
    %v2132 = vld [vmem:[%s7 + $0x478] sm:$0xf]
    %v2133 = vld [vmem:[%s7 + $0x47c] sm:$0xff]
    %v2134 = vld [vmem:[%s7 + $0x484] sm:$0xff]
    %v2135 = vld [vmem:[%s7 + $0x48c] sm:$0xff]
    %v2136 = vld [vmem:[%s7 + $0x494] sm:$0xf]
    %v2137 = vld [vmem:[%s7 + $0x498] sm:$0xff]
    %v2138 = vld [vmem:[%s7 + $0x4a0] sm:$0xff]
    %v2139 = vld [vmem:[%s7 + $0x4a8] sm:$0xff]
    %v2140 = vld [vmem:[%s7 + $0x4b0] sm:$0xf]
    %v2141 = vld [vmem:[%s7 + $0x4b4] sm:$0xff]
    %v2142 = vld [vmem:[%s7 + $0x4bc] sm:$0xff]
    %v2143 = vld [vmem:[%s7 + $0x4c4] sm:$0xff]
    %v2144 = vld [vmem:[%s7 + $0x4cc] sm:$0xf]
    %v2145 = vld [vmem:[%s7 + $0x4d0] sm:$0xff]
    %v2146 = vld [vmem:[%s7 + $0x4d8] sm:$0xff]
    %v2147 = vld [vmem:[%s7 + $0x4e0] sm:$0xff]
    %v2148 = vld [vmem:[%s7 + $0x4e8] sm:$0xf]
    %v2149 = vld [vmem:[%s7 + $0x4ec] sm:$0xff]
    %v2150 = vld [vmem:[%s7 + $0x4f4] sm:$0xff]
    %v2151 = vld [vmem:[%s7 + $0x4fc] sm:$0xff]
    %v2152 = vld [vmem:[%s7 + $0x504] sm:$0xf]
    %v2153 = vld [vmem:[%s7 + $0x508] sm:$0xff]
    %v2154 = vld [vmem:[%s7 + $0x510] sm:$0xff]
    %v2155 = vld [vmem:[%s7 + $0x518] sm:$0xff]
    %v2156 = vld [vmem:[%s7 + $0x520] sm:$0xf]
    %v2157 = vld [vmem:[%s7 + $0x524] sm:$0xff]
    %v2158 = vld [vmem:[%s7 + $0x52c] sm:$0xff]
    %v2159 = vld [vmem:[%s7 + $0x534] sm:$0xff]
    %v2160 = vld [vmem:[%s7 + $0x53c] sm:$0xf]
    %v2161 = vld [vmem:[%s7 + $0x540] sm:$0xff]
    %v2162 = vld [vmem:[%s7 + $0x548] sm:$0xff]
    %v2163 = vld [vmem:[%s7 + $0x550] sm:$0xff]
    %v2164 = vld [vmem:[%s7 + $0x558] sm:$0xf]
    %v2165 = vld [vmem:[%s8] sm:$0x7f]
    %v2167 = vperm.slane %v2165, 0
    %v2168 = vperm.slane %v2165, 1
    %v2169 = vperm.slane %v2165, 2
    %v2170 = vperm.slane %v2165, 3
    %v2171 = vperm.slane %v2165, 4
    %v2172 = vperm.slane %v2165, 5
    %v2173 = vperm.slane %v2165, 6
    %v2377 = vunpack.c.l.b16 %v1969
    %v2378 = vunpack.c.h.b16 %v1969
    %v2379 = vunpack.c.l.b16 %v1970
    %v2380 = vunpack.c.h.b16 %v1970
    %v2381 = vunpack.c.l.b16 %v1971
    %v2382 = vunpack.c.h.b16 %v1971
    %v2383 = vunpack.c.l.b16 %v1972
    %v2384 = vunpack.c.l.b16 %v1973
    %v2385 = vunpack.c.h.b16 %v1973
    %v2386 = vunpack.c.l.b16 %v1974
    %v2387 = vunpack.c.h.b16 %v1974
    %v2388 = vunpack.c.l.b16 %v1975
    %v2389 = vunpack.c.h.b16 %v1975
    %v2390 = vunpack.c.l.b16 %v1976
    %v2391 = vunpack.c.l.b16 %v1977
    %v2392 = vunpack.c.h.b16 %v1977
    %v2393 = vunpack.c.l.b16 %v1978
    %v2394 = vunpack.c.h.b16 %v1978
    %v2395 = vunpack.c.l.b16 %v1979
    %v2396 = vunpack.c.h.b16 %v1979
    %v2397 = vunpack.c.l.b16 %v1980
    %v2398 = vunpack.c.l.b16 %v1981
    %v2399 = vunpack.c.h.b16 %v1981
    %v2400 = vunpack.c.l.b16 %v1982
    %v2401 = vunpack.c.h.b16 %v1982
    %v2402 = vunpack.c.l.b16 %v1983
    %v2403 = vunpack.c.h.b16 %v1983
    %v2404 = vunpack.c.l.b16 %v1984
    %v2405 = vunpack.c.l.b16 %v1985
    %v2406 = vunpack.c.h.b16 %v1985
    %v2407 = vunpack.c.l.b16 %v1986
    %v2408 = vunpack.c.h.b16 %v1986
    %v2409 = vunpack.c.l.b16 %v1987
    %v2410 = vunpack.c.h.b16 %v1987
    %v2411 = vunpack.c.l.b16 %v1988
    %v2412 = vunpack.c.l.b16 %v1989
    %v2413 = vunpack.c.h.b16 %v1989
    %v2414 = vunpack.c.l.b16 %v1990
    %v2415 = vunpack.c.h.b16 %v1990
    %v2416 = vunpack.c.l.b16 %v1991
    %v2417 = vunpack.c.h.b16 %v1991
    %v2418 = vunpack.c.l.b16 %v1992
    %v2419 = vunpack.c.l.b16 %v1993
    %v2420 = vunpack.c.h.b16 %v1993
    %v2421 = vunpack.c.l.b16 %v1994
    %v2422 = vunpack.c.h.b16 %v1994
    %v2423 = vunpack.c.l.b16 %v1995
    %v2424 = vunpack.c.h.b16 %v1995
    %v2425 = vunpack.c.l.b16 %v1996
    %v2426 = vunpack.c.l.b16 %v1997
    %v2427 = vunpack.c.h.b16 %v1997
    %v2428 = vunpack.c.l.b16 %v1998
    %v2429 = vunpack.c.h.b16 %v1998
    %v2430 = vunpack.c.l.b16 %v1999
    %v2431 = vunpack.c.h.b16 %v1999
    %v2432 = vunpack.c.l.b16 %v2000
    %v2433 = vunpack.c.l.b16 %v2001
    %v2434 = vunpack.c.h.b16 %v2001
    %v2435 = vunpack.c.l.b16 %v2002
    %v2436 = vunpack.c.h.b16 %v2002
    %v2437 = vunpack.c.l.b16 %v2003
    %v2438 = vunpack.c.h.b16 %v2003
    %v2439 = vunpack.c.l.b16 %v2004
    %v2440 = vunpack.c.l.b16 %v2005
    %v2441 = vunpack.c.h.b16 %v2005
    %v2442 = vunpack.c.l.b16 %v2006
    %v2443 = vunpack.c.h.b16 %v2006
    %v2444 = vunpack.c.l.b16 %v2007
    %v2445 = vunpack.c.h.b16 %v2007
    %v2446 = vunpack.c.l.b16 %v2008
    %v2447 = vunpack.c.l.b16 %v2009
    %v2448 = vunpack.c.h.b16 %v2009
    %v2449 = vunpack.c.l.b16 %v2010
    %v2450 = vunpack.c.h.b16 %v2010
    %v2451 = vunpack.c.l.b16 %v2011
    %v2452 = vunpack.c.h.b16 %v2011
    %v2453 = vunpack.c.l.b16 %v2012
    %v2454 = vunpack.c.l.b16 %v2013
    %v2455 = vunpack.c.h.b16 %v2013
    %v2456 = vunpack.c.l.b16 %v2014
    %v2457 = vunpack.c.h.b16 %v2014
    %v2458 = vunpack.c.l.b16 %v2015
    %v2459 = vunpack.c.h.b16 %v2015
    %v2460 = vunpack.c.l.b16 %v2016
    %v2461 = vunpack.c.l.b16 %v2017
    %v2462 = vunpack.c.h.b16 %v2017
    %v2463 = vunpack.c.l.b16 %v2018
    %v2464 = vunpack.c.h.b16 %v2018
    %v2465 = vunpack.c.l.b16 %v2019
    %v2466 = vunpack.c.h.b16 %v2019
    %v2467 = vunpack.c.l.b16 %v2020
    %v2468 = vunpack.c.l.b16 %v2021
    %v2469 = vunpack.c.h.b16 %v2021
    %v2470 = vunpack.c.l.b16 %v2022
    %v2471 = vunpack.c.h.b16 %v2022
    %v2472 = vunpack.c.l.b16 %v2023
    %v2473 = vunpack.c.h.b16 %v2023
    %v2474 = vunpack.c.l.b16 %v2024
    %v2475 = vunpack.c.l.b16 %v2025
    %v2476 = vunpack.c.h.b16 %v2025
    %v2477 = vunpack.c.l.b16 %v2026
    %v2478 = vunpack.c.h.b16 %v2026
    %v2479 = vunpack.c.l.b16 %v2027
    %v2480 = vunpack.c.h.b16 %v2027
    %v2481 = vunpack.c.l.b16 %v2028
    %v2482 = vunpack.c.l.b16 %v2029
    %v2483 = vunpack.c.h.b16 %v2029
    %v2484 = vunpack.c.l.b16 %v2030
    %v2485 = vunpack.c.h.b16 %v2030
    %v2486 = vunpack.c.l.b16 %v2031
    %v2487 = vunpack.c.h.b16 %v2031
    %v2488 = vunpack.c.l.b16 %v2032
    %v2489 = vunpack.c.l.b16 %v2033
    %v2490 = vunpack.c.h.b16 %v2033
    %v2491 = vunpack.c.l.b16 %v2034
    %v2492 = vunpack.c.h.b16 %v2034
    %v2493 = vunpack.c.l.b16 %v2035
    %v2494 = vunpack.c.h.b16 %v2035
    %v2495 = vunpack.c.l.b16 %v2036
    %v2496 = vunpack.c.l.b16 %v2037
    %v2497 = vunpack.c.h.b16 %v2037
    %v2498 = vunpack.c.l.b16 %v2038
    %v2499 = vunpack.c.h.b16 %v2038
    %v2500 = vunpack.c.l.b16 %v2039
    %v2501 = vunpack.c.h.b16 %v2039
    %v2502 = vunpack.c.l.b16 %v2040
    %v2503 = vunpack.c.l.b16 %v2041
    %v2504 = vunpack.c.h.b16 %v2041
    %v2505 = vunpack.c.l.b16 %v2042
    %v2506 = vunpack.c.h.b16 %v2042
    %v2507 = vunpack.c.l.b16 %v2043
    %v2508 = vunpack.c.h.b16 %v2043
    %v2509 = vunpack.c.l.b16 %v2044
    %v2510 = vunpack.c.l.b16 %v2045
    %v2511 = vunpack.c.h.b16 %v2045
    %v2512 = vunpack.c.l.b16 %v2046
    %v2513 = vunpack.c.h.b16 %v2046
    %v2514 = vunpack.c.l.b16 %v2047
    %v2515 = vunpack.c.h.b16 %v2047
    %v2516 = vunpack.c.l.b16 %v2048
    %v2517 = vunpack.c.l.b16 %v2049
    %v2518 = vunpack.c.h.b16 %v2049
    %v2519 = vunpack.c.l.b16 %v2050
    %v2520 = vunpack.c.h.b16 %v2050
    %v2521 = vunpack.c.l.b16 %v2051
    %v2522 = vunpack.c.h.b16 %v2051
    %v2523 = vunpack.c.l.b16 %v2052
    %v2524 = vunpack.c.l.b16 %v2053
    %v2525 = vunpack.c.h.b16 %v2053
    %v2526 = vunpack.c.l.b16 %v2054
    %v2527 = vunpack.c.h.b16 %v2054
    %v2528 = vunpack.c.l.b16 %v2055
    %v2529 = vunpack.c.h.b16 %v2055
    %v2530 = vunpack.c.l.b16 %v2056
    %v2531 = vunpack.c.l.b16 %v2057
    %v2532 = vunpack.c.h.b16 %v2057
    %v2533 = vunpack.c.l.b16 %v2058
    %v2534 = vunpack.c.h.b16 %v2058
    %v2535 = vunpack.c.l.b16 %v2059
    %v2536 = vunpack.c.h.b16 %v2059
    %v2537 = vunpack.c.l.b16 %v2060
    %v2538 = vunpack.c.l.b16 %v2061
    %v2539 = vunpack.c.h.b16 %v2061
    %v2540 = vunpack.c.l.b16 %v2062
    %v2541 = vunpack.c.h.b16 %v2062
    %v2542 = vunpack.c.l.b16 %v2063
    %v2543 = vunpack.c.h.b16 %v2063
    %v2544 = vunpack.c.l.b16 %v2064
    %v2545 = vunpack.c.l.b16 %v2065
    %v2546 = vunpack.c.h.b16 %v2065
    %v2547 = vunpack.c.l.b16 %v2066
    %v2548 = vunpack.c.h.b16 %v2066
    %v2549 = vunpack.c.l.b16 %v2067
    %v2550 = vunpack.c.h.b16 %v2067
    %v2551 = vunpack.c.l.b16 %v2068
    %v2552 = vunpack.c.l.b16 %v2069
    %v2553 = vunpack.c.h.b16 %v2069
    %v2554 = vunpack.c.l.b16 %v2070
    %v2555 = vunpack.c.h.b16 %v2070
    %v2556 = vunpack.c.l.b16 %v2071
    %v2557 = vunpack.c.h.b16 %v2071
    %v2558 = vunpack.c.l.b16 %v2072
    %v2559 = vunpack.c.l.b16 %v2073
    %v2560 = vunpack.c.h.b16 %v2073
    %v2561 = vunpack.c.l.b16 %v2074
    %v2562 = vunpack.c.h.b16 %v2074
    %v2563 = vunpack.c.l.b16 %v2075
    %v2564 = vunpack.c.h.b16 %v2075
    %v2565 = vunpack.c.l.b16 %v2076
    %v2566 = vunpack.c.l.b16 %v2077
    %v2567 = vunpack.c.h.b16 %v2077
    %v2568 = vunpack.c.l.b16 %v2078
    %v2569 = vunpack.c.h.b16 %v2078
    %v2570 = vunpack.c.l.b16 %v2079
    %v2571 = vunpack.c.h.b16 %v2079
    %v2572 = vunpack.c.l.b16 %v2080
    %v2573 = vunpack.c.l.b16 %v2081
    %v2574 = vunpack.c.h.b16 %v2081
    %v2575 = vunpack.c.l.b16 %v2082
    %v2576 = vunpack.c.h.b16 %v2082
    %v2577 = vunpack.c.l.b16 %v2083
    %v2578 = vunpack.c.h.b16 %v2083
    %v2579 = vunpack.c.l.b16 %v2084
    %v2580 = vunpack.c.l.b16 %v2085
    %v2581 = vunpack.c.h.b16 %v2085
    %v2582 = vunpack.c.l.b16 %v2086
    %v2583 = vunpack.c.h.b16 %v2086
    %v2584 = vunpack.c.l.b16 %v2087
    %v2585 = vunpack.c.h.b16 %v2087
    %v2586 = vunpack.c.l.b16 %v2088
    %v2587 = vunpack.c.l.b16 %v2089
    %v2588 = vunpack.c.h.b16 %v2089
    %v2589 = vunpack.c.l.b16 %v2090
    %v2590 = vunpack.c.h.b16 %v2090
    %v2591 = vunpack.c.l.b16 %v2091
    %v2592 = vunpack.c.h.b16 %v2091
    %v2593 = vunpack.c.l.b16 %v2092
    %v2594 = vunpack.c.l.b16 %v2093
    %v2595 = vunpack.c.h.b16 %v2093
    %v2596 = vunpack.c.l.b16 %v2094
    %v2597 = vunpack.c.h.b16 %v2094
    %v2598 = vunpack.c.l.b16 %v2095
    %v2599 = vunpack.c.h.b16 %v2095
    %v2600 = vunpack.c.l.b16 %v2096
    %v2601 = vunpack.c.l.b16 %v2097
    %v2602 = vunpack.c.h.b16 %v2097
    %v2603 = vunpack.c.l.b16 %v2098
    %v2604 = vunpack.c.h.b16 %v2098
    %v2605 = vunpack.c.l.b16 %v2099
    %v2606 = vunpack.c.h.b16 %v2099
    %v2607 = vunpack.c.l.b16 %v2100
    %v2608 = vunpack.c.l.b16 %v2101
    %v2609 = vunpack.c.h.b16 %v2101
    %v2610 = vunpack.c.l.b16 %v2102
    %v2611 = vunpack.c.h.b16 %v2102
    %v2612 = vunpack.c.l.b16 %v2103
    %v2613 = vunpack.c.h.b16 %v2103
    %v2614 = vunpack.c.l.b16 %v2104
    %v2615 = vunpack.c.l.b16 %v2105
    %v2616 = vunpack.c.h.b16 %v2105
    %v2617 = vunpack.c.l.b16 %v2106
    %v2618 = vunpack.c.h.b16 %v2106
    %v2619 = vunpack.c.l.b16 %v2107
    %v2620 = vunpack.c.h.b16 %v2107
    %v2621 = vunpack.c.l.b16 %v2108
    %v2622 = vunpack.c.l.b16 %v2109
    %v2623 = vunpack.c.h.b16 %v2109
    %v2624 = vunpack.c.l.b16 %v2110
    %v2625 = vunpack.c.h.b16 %v2110
    %v2626 = vunpack.c.l.b16 %v2111
    %v2627 = vunpack.c.h.b16 %v2111
    %v2628 = vunpack.c.l.b16 %v2112
    %v2629 = vunpack.c.l.b16 %v2113
    %v2630 = vunpack.c.h.b16 %v2113
    %v2631 = vunpack.c.l.b16 %v2114
    %v2632 = vunpack.c.h.b16 %v2114
    %v2633 = vunpack.c.l.b16 %v2115
    %v2634 = vunpack.c.h.b16 %v2115
    %v2635 = vunpack.c.l.b16 %v2116
    %v2636 = vunpack.c.l.b16 %v2117
    %v2637 = vunpack.c.h.b16 %v2117
    %v2638 = vunpack.c.l.b16 %v2118
    %v2639 = vunpack.c.h.b16 %v2118
    %v2640 = vunpack.c.l.b16 %v2119
    %v2641 = vunpack.c.h.b16 %v2119
    %v2642 = vunpack.c.l.b16 %v2120
    %v2643 = vunpack.c.l.b16 %v2121
    %v2644 = vunpack.c.h.b16 %v2121
    %v2645 = vunpack.c.l.b16 %v2122
    %v2646 = vunpack.c.h.b16 %v2122
    %v2647 = vunpack.c.l.b16 %v2123
    %v2648 = vunpack.c.h.b16 %v2123
    %v2649 = vunpack.c.l.b16 %v2124
    %v2650 = vunpack.c.l.b16 %v2125
    %v2651 = vunpack.c.h.b16 %v2125
    %v2652 = vunpack.c.l.b16 %v2126
    %v2653 = vunpack.c.h.b16 %v2126
    %v2654 = vunpack.c.l.b16 %v2127
    %v2655 = vunpack.c.h.b16 %v2127
    %v2656 = vunpack.c.l.b16 %v2128
    %v2657 = vunpack.c.l.b16 %v2129
    %v2658 = vunpack.c.h.b16 %v2129
    %v2659 = vunpack.c.l.b16 %v2130
    %v2660 = vunpack.c.h.b16 %v2130
    %v2661 = vunpack.c.l.b16 %v2131
    %v2662 = vunpack.c.h.b16 %v2131
    %v2663 = vunpack.c.l.b16 %v2132
    %v2664 = vunpack.c.l.b16 %v2133
    %v2665 = vunpack.c.h.b16 %v2133
    %v2666 = vunpack.c.l.b16 %v2134
    %v2667 = vunpack.c.h.b16 %v2134
    %v2668 = vunpack.c.l.b16 %v2135
    %v2669 = vunpack.c.h.b16 %v2135
    %v2670 = vunpack.c.l.b16 %v2136
    %v2671 = vunpack.c.l.b16 %v2137
    %v2672 = vunpack.c.h.b16 %v2137
    %v2673 = vunpack.c.l.b16 %v2138
    %v2674 = vunpack.c.h.b16 %v2138
    %v2675 = vunpack.c.l.b16 %v2139
    %v2676 = vunpack.c.h.b16 %v2139
    %v2677 = vunpack.c.l.b16 %v2140
    %v2678 = vunpack.c.l.b16 %v2141
    %v2679 = vunpack.c.h.b16 %v2141
    %v2680 = vunpack.c.l.b16 %v2142
    %v2681 = vunpack.c.h.b16 %v2142
    %v2682 = vunpack.c.l.b16 %v2143
    %v2683 = vunpack.c.h.b16 %v2143
    %v2684 = vunpack.c.l.b16 %v2144
    %v2685 = vunpack.c.l.b16 %v2145
    %v2686 = vunpack.c.h.b16 %v2145
    %v2687 = vunpack.c.l.b16 %v2146
    %v2688 = vunpack.c.h.b16 %v2146
    %v2689 = vunpack.c.l.b16 %v2147
    %v2690 = vunpack.c.h.b16 %v2147
    %v2691 = vunpack.c.l.b16 %v2148
    %v2692 = vunpack.c.l.b16 %v2149
    %v2693 = vunpack.c.h.b16 %v2149
    %v2694 = vunpack.c.l.b16 %v2150
    %v2695 = vunpack.c.h.b16 %v2150
    %v2696 = vunpack.c.l.b16 %v2151
    %v2697 = vunpack.c.h.b16 %v2151
    %v2698 = vunpack.c.l.b16 %v2152
    %v2699 = vunpack.c.l.b16 %v2153
    %v2700 = vunpack.c.h.b16 %v2153
    %v2701 = vunpack.c.l.b16 %v2154
    %v2702 = vunpack.c.h.b16 %v2154
    %v2703 = vunpack.c.l.b16 %v2155
    %v2704 = vunpack.c.h.b16 %v2155
    %v2705 = vunpack.c.l.b16 %v2156
    %v2706 = vunpack.c.l.b16 %v2157
    %v2707 = vunpack.c.h.b16 %v2157
    %v2708 = vunpack.c.l.b16 %v2158
    %v2709 = vunpack.c.h.b16 %v2158
    %v2710 = vunpack.c.l.b16 %v2159
    %v2711 = vunpack.c.h.b16 %v2159
    %v2712 = vunpack.c.l.b16 %v2160
    %v2713 = vunpack.c.l.b16 %v2161
    %v2714 = vunpack.c.h.b16 %v2161
    %v2715 = vunpack.c.l.b16 %v2162
    %v2716 = vunpack.c.h.b16 %v2162
    %v2717 = vunpack.c.l.b16 %v2163
    %v2718 = vunpack.c.h.b16 %v2163
    %v2719 = vunpack.c.l.b16 %v2164
    %v2720 = vpack.c.b16 %v2384, %v2377
    %v2721 = vpack.c.b16 %v2385, %v2378
    %v2722 = vpack.c.b16 %v2386, %v2379
    %v2723 = vpack.c.b16 %v2387, %v2380
    %v2724 = vpack.c.b16 %v2388, %v2381
    %v2725 = vpack.c.b16 %v2389, %v2382
    %v2726 = vpack.c.b16 %v2390, %v2383
    %v2727 = vpack.c.b16 %v2398, %v2391
    %v2728 = vpack.c.b16 %v2399, %v2392
    %v2729 = vpack.c.b16 %v2400, %v2393
    %v2730 = vpack.c.b16 %v2401, %v2394
    %v2731 = vpack.c.b16 %v2402, %v2395
    %v2732 = vpack.c.b16 %v2403, %v2396
    %v2733 = vpack.c.b16 %v2404, %v2397
    %v2734 = vpack.c.b16 %v2412, %v2405
    %v2735 = vpack.c.b16 %v2413, %v2406
    %v2736 = vpack.c.b16 %v2414, %v2407
    %v2737 = vpack.c.b16 %v2415, %v2408
    %v2738 = vpack.c.b16 %v2416, %v2409
    %v2739 = vpack.c.b16 %v2417, %v2410
    %v2740 = vpack.c.b16 %v2418, %v2411
    %v2741 = vpack.c.b16 %v2426, %v2419
    %v2742 = vpack.c.b16 %v2427, %v2420
    %v2743 = vpack.c.b16 %v2428, %v2421
    %v2744 = vpack.c.b16 %v2429, %v2422
    %v2745 = vpack.c.b16 %v2430, %v2423
    %v2746 = vpack.c.b16 %v2431, %v2424
    %v2747 = vpack.c.b16 %v2432, %v2425
    %v2748 = vpack.c.b16 %v2440, %v2433
    %v2749 = vpack.c.b16 %v2441, %v2434
    %v2750 = vpack.c.b16 %v2442, %v2435
    %v2751 = vpack.c.b16 %v2443, %v2436
    %v2752 = vpack.c.b16 %v2444, %v2437
    %v2753 = vpack.c.b16 %v2445, %v2438
    %v2754 = vpack.c.b16 %v2446, %v2439
    %v2755 = vpack.c.b16 %v2454, %v2447
    %v2756 = vpack.c.b16 %v2455, %v2448
    %v2757 = vpack.c.b16 %v2456, %v2449
    %v2758 = vpack.c.b16 %v2457, %v2450
    %v2759 = vpack.c.b16 %v2458, %v2451
    %v2760 = vpack.c.b16 %v2459, %v2452
    %v2761 = vpack.c.b16 %v2460, %v2453
    %v2762 = vpack.c.b16 %v2468, %v2461
    %v2763 = vpack.c.b16 %v2469, %v2462
    %v2764 = vpack.c.b16 %v2470, %v2463
    %v2765 = vpack.c.b16 %v2471, %v2464
    %v2766 = vpack.c.b16 %v2472, %v2465
    %v2767 = vpack.c.b16 %v2473, %v2466
    %v2768 = vpack.c.b16 %v2474, %v2467
    %v2769 = vpack.c.b16 %v2482, %v2475
    %v2770 = vpack.c.b16 %v2483, %v2476
    %v2771 = vpack.c.b16 %v2484, %v2477
    %v2772 = vpack.c.b16 %v2485, %v2478
    %v2773 = vpack.c.b16 %v2486, %v2479
    %v2774 = vpack.c.b16 %v2487, %v2480
    %v2775 = vpack.c.b16 %v2488, %v2481
    %v2776 = vpack.c.b16 %v2496, %v2489
    %v2777 = vpack.c.b16 %v2497, %v2490
    %v2778 = vpack.c.b16 %v2498, %v2491
    %v2779 = vpack.c.b16 %v2499, %v2492
    %v2780 = vpack.c.b16 %v2500, %v2493
    %v2781 = vpack.c.b16 %v2501, %v2494
    %v2782 = vpack.c.b16 %v2502, %v2495
    %v2783 = vpack.c.b16 %v2510, %v2503
    %v2784 = vpack.c.b16 %v2511, %v2504
    %v2785 = vpack.c.b16 %v2512, %v2505
    %v2786 = vpack.c.b16 %v2513, %v2506
    %v2787 = vpack.c.b16 %v2514, %v2507
    %v2788 = vpack.c.b16 %v2515, %v2508
    %v2789 = vpack.c.b16 %v2516, %v2509
    %v2790 = vpack.c.b16 %v2524, %v2517
    %v2791 = vpack.c.b16 %v2525, %v2518
    %v2792 = vpack.c.b16 %v2526, %v2519
    %v2793 = vpack.c.b16 %v2527, %v2520
    %v2794 = vpack.c.b16 %v2528, %v2521
    %v2795 = vpack.c.b16 %v2529, %v2522
    %v2796 = vpack.c.b16 %v2530, %v2523
    %v2797 = vpack.c.b16 %v2538, %v2531
    %v2798 = vpack.c.b16 %v2539, %v2532
    %v2799 = vpack.c.b16 %v2540, %v2533
    %v2800 = vpack.c.b16 %v2541, %v2534
    %v2801 = vpack.c.b16 %v2542, %v2535
    %v2802 = vpack.c.b16 %v2543, %v2536
    %v2803 = vpack.c.b16 %v2544, %v2537
    %v2804 = vpack.c.b16 %v2552, %v2545
    %v2805 = vpack.c.b16 %v2553, %v2546
    %v2806 = vpack.c.b16 %v2554, %v2547
    %v2807 = vpack.c.b16 %v2555, %v2548
    %v2808 = vpack.c.b16 %v2556, %v2549
    %v2809 = vpack.c.b16 %v2557, %v2550
    %v2810 = vpack.c.b16 %v2558, %v2551
    %v2811 = vpack.c.b16 %v2566, %v2559
    %v2812 = vpack.c.b16 %v2567, %v2560
    %v2813 = vpack.c.b16 %v2568, %v2561
    %v2814 = vpack.c.b16 %v2569, %v2562
    %v2815 = vpack.c.b16 %v2570, %v2563
    %v2816 = vpack.c.b16 %v2571, %v2564
    %v2817 = vpack.c.b16 %v2572, %v2565
    %v2818 = vpack.c.b16 %v2580, %v2573
    %v2819 = vpack.c.b16 %v2581, %v2574
    %v2820 = vpack.c.b16 %v2582, %v2575
    %v2821 = vpack.c.b16 %v2583, %v2576
    %v2822 = vpack.c.b16 %v2584, %v2577
    %v2823 = vpack.c.b16 %v2585, %v2578
    %v2824 = vpack.c.b16 %v2586, %v2579
    %v2825 = vpack.c.b16 %v2594, %v2587
    %v2826 = vpack.c.b16 %v2595, %v2588
    %v2827 = vpack.c.b16 %v2596, %v2589
    %v2828 = vpack.c.b16 %v2597, %v2590
    %v2829 = vpack.c.b16 %v2598, %v2591
    %v2830 = vpack.c.b16 %v2599, %v2592
    %v2831 = vpack.c.b16 %v2600, %v2593
    %v2832 = vpack.c.b16 %v2608, %v2601
    %v2833 = vpack.c.b16 %v2609, %v2602
    %v2834 = vpack.c.b16 %v2610, %v2603
    %v2835 = vpack.c.b16 %v2611, %v2604
    %v2836 = vpack.c.b16 %v2612, %v2605
    %v2837 = vpack.c.b16 %v2613, %v2606
    %v2838 = vpack.c.b16 %v2614, %v2607
    %v2839 = vpack.c.b16 %v2622, %v2615
    %v2840 = vpack.c.b16 %v2623, %v2616
    %v2841 = vpack.c.b16 %v2624, %v2617
    %v2842 = vpack.c.b16 %v2625, %v2618
    %v2843 = vpack.c.b16 %v2626, %v2619
    %v2844 = vpack.c.b16 %v2627, %v2620
    %v2845 = vpack.c.b16 %v2628, %v2621
    %v2846 = vpack.c.b16 %v2636, %v2629
    %v2847 = vpack.c.b16 %v2637, %v2630
    %v2848 = vpack.c.b16 %v2638, %v2631
    %v2849 = vpack.c.b16 %v2639, %v2632
    %v2850 = vpack.c.b16 %v2640, %v2633
    %v2851 = vpack.c.b16 %v2641, %v2634
    %v2852 = vpack.c.b16 %v2642, %v2635
    %v2853 = vpack.c.b16 %v2650, %v2643
    %v2854 = vpack.c.b16 %v2651, %v2644
    %v2855 = vpack.c.b16 %v2652, %v2645
    %v2856 = vpack.c.b16 %v2653, %v2646
    %v2857 = vpack.c.b16 %v2654, %v2647
    %v2858 = vpack.c.b16 %v2655, %v2648
    %v2859 = vpack.c.b16 %v2656, %v2649
    %v2860 = vpack.c.b16 %v2664, %v2657
    %v2861 = vpack.c.b16 %v2665, %v2658
    %v2862 = vpack.c.b16 %v2666, %v2659
    %v2863 = vpack.c.b16 %v2667, %v2660
    %v2864 = vpack.c.b16 %v2668, %v2661
    %v2865 = vpack.c.b16 %v2669, %v2662
    %v2866 = vpack.c.b16 %v2670, %v2663
    %v2867 = vpack.c.b16 %v2678, %v2671
    %v2868 = vpack.c.b16 %v2679, %v2672
    %v2869 = vpack.c.b16 %v2680, %v2673
    %v2870 = vpack.c.b16 %v2681, %v2674
    %v2871 = vpack.c.b16 %v2682, %v2675
    %v2872 = vpack.c.b16 %v2683, %v2676
    %v2873 = vpack.c.b16 %v2684, %v2677
    %v2874 = vpack.c.b16 %v2692, %v2685
    %v2875 = vpack.c.b16 %v2693, %v2686
    %v2876 = vpack.c.b16 %v2694, %v2687
    %v2877 = vpack.c.b16 %v2695, %v2688
    %v2878 = vpack.c.b16 %v2696, %v2689
    %v2879 = vpack.c.b16 %v2697, %v2690
    %v2880 = vpack.c.b16 %v2698, %v2691
    %v2881 = vpack.c.b16 %v2706, %v2699
    %v2882 = vpack.c.b16 %v2707, %v2700
    %v2883 = vpack.c.b16 %v2708, %v2701
    %v2884 = vpack.c.b16 %v2709, %v2702
    %v2885 = vpack.c.b16 %v2710, %v2703
    %v2886 = vpack.c.b16 %v2711, %v2704
    %v2887 = vpack.c.b16 %v2712, %v2705
    %v2888 = vpack.c.b16 %v2713, %v2713
    %v2889 = vpack.c.b16 %v2714, %v2714
    %v2890 = vpack.c.b16 %v2715, %v2715
    %v2891 = vpack.c.b16 %v2716, %v2716
    %v2892 = vpack.c.b16 %v2717, %v2717
    %v2893 = vpack.c.b16 %v2718, %v2718
    %v2894 = vpack.c.b16 %v2719, %v2719
    %v3064 = vsel %vm1810, %v1968, 0
    %v3067 = vsel %vm1814, %v2888, 0
    %v3070 = vsel %vm1814, %v2889, 0
    %v3073 = vsel %vm1814, %v2890, 0
    %v3076 = vsel %vm1814, %v2891, 0
    %v3079 = vsel %vm1814, %v2892, 0
    %v3082 = vsel %vm1814, %v2893, 0
    %v3085 = vsel %vm1814, %v2894, 0
    %3087 = vmatpush.bf16.msra.mxu0 %v2769
    %3088 = vmatpush.bf16.msra.mxu0 %v2762
    %3089 = vmatpush.bf16.msra.mxu0 %v2755
    %3090 = vmatpush.bf16.msra.mxu0 %v2748
    %3091 = vmatpush.bf16.msra.mxu0 %v2741
    %3092 = vmatpush.bf16.msra.mxu0 %v2734
    %3093 = vmatpush.bf16.msra.mxu0 %v2727
    %3094 = vmatpush.bf16.msra.mxu0 %v2720
    %3095 = vmatmul.bf16.gmra.mxu0 %v1965
    %v3096 = vpop.f32.mrf.mxu0
    %v3097 = vadd.f32 %v2167, %v3096
    %v3098 = vpop.f32.mrf.mxu0
    %3099 = vdwg.mxu0
    %3100 = vmatpush.bf16.msra.mxu0 %v2825
    %3101 = vmatpush.bf16.msra.mxu0 %v2818
    %3102 = vmatpush.bf16.msra.mxu0 %v2811
    %3103 = vmatpush.bf16.msra.mxu0 %v2804
    %3104 = vmatpush.bf16.msra.mxu0 %v2797
    %3105 = vmatpush.bf16.msra.mxu0 %v2790
    %3106 = vmatpush.bf16.msra.mxu0 %v2783
    %3107 = vmatpush.bf16.msra.mxu0 %v2776
    %3108 = vmatmul.bf16.gmra.mxu0 %v1966
    %v3109 = vpop.f32.mrf.mxu0
    %v3110 = vadd.f32 %v3097, %v3109
    %v3111 = vpop.f32.mrf.mxu0
    %3112 = vdwg.mxu0
    %3113 = vmatpush.bf16.msra.mxu0 %v2881
    %3114 = vmatpush.bf16.msra.mxu0 %v2874
    %3115 = vmatpush.bf16.msra.mxu0 %v2867
    %3116 = vmatpush.bf16.msra.mxu0 %v2860
    %3117 = vmatpush.bf16.msra.mxu0 %v2853
    %3118 = vmatpush.bf16.msra.mxu0 %v2846
    %3119 = vmatpush.bf16.msra.mxu0 %v2839
    %3120 = vmatpush.bf16.msra.mxu0 %v2832
    %3121 = vmatmul.bf16.gmra.mxu0 %v1967
    %v3122 = vpop.f32.mrf.mxu0
    %v3123 = vadd.f32 %v3110, %v3122
    %v3124 = vpop.f32.mrf.mxu0
    %3125 = vdwg.mxu0
    %3126 = vmatpush.bf16.msra.mxu0 0
    %3127 = vmatpush.bf16.msra.mxu0 0
    %3128 = vmatpush.bf16.msra.mxu0 0
    %3129 = vmatpush.bf16.msra.mxu0 0
    %3130 = vmatpush.bf16.msra.mxu0 0
    %3131 = vmatpush.bf16.msra.mxu0 0
    %3132 = vmatpush.bf16.msra.mxu0 0
    %3133 = vmatpush.bf16.msra.mxu0 %v3067
    %3134 = vmatmul.bf16.gmra.mxu0 %v3064
    %v3135 = vpop.f32.mrf.mxu0
    %v3136 = vadd.f32 %v3123, %v3135
    %v3137 = vpop.f32.mrf.mxu0
    %3138 = vdwg.mxu0
    %3139 = vmatpush.bf16.msra.mxu0 %v2770
    %3140 = vmatpush.bf16.msra.mxu0 %v2763
    %3141 = vmatpush.bf16.msra.mxu0 %v2756
    %3142 = vmatpush.bf16.msra.mxu0 %v2749
    %3143 = vmatpush.bf16.msra.mxu0 %v2742
    %3144 = vmatpush.bf16.msra.mxu0 %v2735
    %3145 = vmatpush.bf16.msra.mxu0 %v2728
    %3146 = vmatpush.bf16.msra.mxu0 %v2721
    %3147 = vmatmul.bf16.gmra.mxu0 %v1965
    %v3148 = vpop.f32.mrf.mxu0
    %v3149 = vadd.f32 %v2168, %v3148
    %v3150 = vpop.f32.mrf.mxu0
    %3151 = vdwg.mxu0
    %3152 = vmatpush.bf16.msra.mxu0 %v2826
    %3153 = vmatpush.bf16.msra.mxu0 %v2819
    %3154 = vmatpush.bf16.msra.mxu0 %v2812
    %3155 = vmatpush.bf16.msra.mxu0 %v2805
    %3156 = vmatpush.bf16.msra.mxu0 %v2798
    %3157 = vmatpush.bf16.msra.mxu0 %v2791
    %3158 = vmatpush.bf16.msra.mxu0 %v2784
    %3159 = vmatpush.bf16.msra.mxu0 %v2777
    %3160 = vmatmul.bf16.gmra.mxu0 %v1966
    %v3161 = vpop.f32.mrf.mxu0
    %v3162 = vadd.f32 %v3149, %v3161
    %v3163 = vpop.f32.mrf.mxu0
    %3164 = vdwg.mxu0
    %3165 = vmatpush.bf16.msra.mxu0 %v2882
    %3166 = vmatpush.bf16.msra.mxu0 %v2875
    %3167 = vmatpush.bf16.msra.mxu0 %v2868
    %3168 = vmatpush.bf16.msra.mxu0 %v2861
    %3169 = vmatpush.bf16.msra.mxu0 %v2854
    %3170 = vmatpush.bf16.msra.mxu0 %v2847
    %3171 = vmatpush.bf16.msra.mxu0 %v2840
    %3172 = vmatpush.bf16.msra.mxu0 %v2833
    %3173 = vmatmul.bf16.gmra.mxu0 %v1967
    %v3174 = vpop.f32.mrf.mxu0
    %v3175 = vadd.f32 %v3162, %v3174
    %v3176 = vpop.f32.mrf.mxu0
    %3177 = vdwg.mxu0
    %3178 = vmatpush.bf16.msra.mxu0 0
    %3179 = vmatpush.bf16.msra.mxu0 0
    %3180 = vmatpush.bf16.msra.mxu0 0
    %3181 = vmatpush.bf16.msra.mxu0 0
    %3182 = vmatpush.bf16.msra.mxu0 0
    %3183 = vmatpush.bf16.msra.mxu0 0
    %3184 = vmatpush.bf16.msra.mxu0 0
    %3185 = vmatpush.bf16.msra.mxu0 %v3070
    %3186 = vmatmul.bf16.gmra.mxu0 %v3064
    %v3187 = vpop.f32.mrf.mxu0
    %v3188 = vadd.f32 %v3175, %v3187
    %v3189 = vpop.f32.mrf.mxu0
    %3190 = vdwg.mxu0
    %3191 = vmatpush.bf16.msra.mxu0 %v2771
    %3192 = vmatpush.bf16.msra.mxu0 %v2764
    %3193 = vmatpush.bf16.msra.mxu0 %v2757
    %3194 = vmatpush.bf16.msra.mxu0 %v2750
    %3195 = vmatpush.bf16.msra.mxu0 %v2743
    %3196 = vmatpush.bf16.msra.mxu0 %v2736
    %3197 = vmatpush.bf16.msra.mxu0 %v2729
    %3198 = vmatpush.bf16.msra.mxu0 %v2722
    %3199 = vmatmul.bf16.gmra.mxu0 %v1965
    %v3200 = vpop.f32.mrf.mxu0
    %v3201 = vadd.f32 %v2169, %v3200
    %v3202 = vpop.f32.mrf.mxu0
    %3203 = vdwg.mxu0
    %3204 = vmatpush.bf16.msra.mxu0 %v2827
    %3205 = vmatpush.bf16.msra.mxu0 %v2820
    %3206 = vmatpush.bf16.msra.mxu0 %v2813
    %3207 = vmatpush.bf16.msra.mxu0 %v2806
    %3208 = vmatpush.bf16.msra.mxu0 %v2799
    %3209 = vmatpush.bf16.msra.mxu0 %v2792
    %3210 = vmatpush.bf16.msra.mxu0 %v2785
    %3211 = vmatpush.bf16.msra.mxu0 %v2778
    %3212 = vmatmul.bf16.gmra.mxu0 %v1966
    %v3213 = vpop.f32.mrf.mxu0
    %v3214 = vadd.f32 %v3201, %v3213
    %v3215 = vpop.f32.mrf.mxu0
    %3216 = vdwg.mxu0
    %3217 = vmatpush.bf16.msra.mxu0 %v2883
    %3218 = vmatpush.bf16.msra.mxu0 %v2876
    %3219 = vmatpush.bf16.msra.mxu0 %v2869
    %3220 = vmatpush.bf16.msra.mxu0 %v2862
    %3221 = vmatpush.bf16.msra.mxu0 %v2855
    %3222 = vmatpush.bf16.msra.mxu0 %v2848
    %3223 = vmatpush.bf16.msra.mxu0 %v2841
    %3224 = vmatpush.bf16.msra.mxu0 %v2834
    %3225 = vmatmul.bf16.gmra.mxu0 %v1967
    %v3226 = vpop.f32.mrf.mxu0
    %v3227 = vadd.f32 %v3214, %v3226
    %v3228 = vpop.f32.mrf.mxu0
    %3229 = vdwg.mxu0
    %3230 = vmatpush.bf16.msra.mxu0 0
    %3231 = vmatpush.bf16.msra.mxu0 0
    %3232 = vmatpush.bf16.msra.mxu0 0
    %3233 = vmatpush.bf16.msra.mxu0 0
    %3234 = vmatpush.bf16.msra.mxu0 0
    %3235 = vmatpush.bf16.msra.mxu0 0
    %3236 = vmatpush.bf16.msra.mxu0 0
    %3237 = vmatpush.bf16.msra.mxu0 %v3073
    %3238 = vmatmul.bf16.gmra.mxu0 %v3064
    %v3239 = vpop.f32.mrf.mxu0
    %v3240 = vadd.f32 %v3227, %v3239
    %v3241 = vpop.f32.mrf.mxu0
    %3242 = vdwg.mxu0
    %3243 = vmatpush.bf16.msra.mxu0 %v2772
    %3244 = vmatpush.bf16.msra.mxu0 %v2765
    %3245 = vmatpush.bf16.msra.mxu0 %v2758
    %3246 = vmatpush.bf16.msra.mxu0 %v2751
    %3247 = vmatpush.bf16.msra.mxu0 %v2744
    %3248 = vmatpush.bf16.msra.mxu0 %v2737
    %3249 = vmatpush.bf16.msra.mxu0 %v2730
    %3250 = vmatpush.bf16.msra.mxu0 %v2723
    %3251 = vmatmul.bf16.gmra.mxu0 %v1965
    %v3252 = vpop.f32.mrf.mxu0
    %v3253 = vadd.f32 %v2170, %v3252
    %v3254 = vpop.f32.mrf.mxu0
    %3255 = vdwg.mxu0
    %3256 = vmatpush.bf16.msra.mxu0 %v2828
    %3257 = vmatpush.bf16.msra.mxu0 %v2821
    %3258 = vmatpush.bf16.msra.mxu0 %v2814
    %3259 = vmatpush.bf16.msra.mxu0 %v2807
    %3260 = vmatpush.bf16.msra.mxu0 %v2800
    %3261 = vmatpush.bf16.msra.mxu0 %v2793
    %3262 = vmatpush.bf16.msra.mxu0 %v2786
    %3263 = vmatpush.bf16.msra.mxu0 %v2779
    %3264 = vmatmul.bf16.gmra.mxu0 %v1966
    %v3265 = vpop.f32.mrf.mxu0
    %v3266 = vadd.f32 %v3253, %v3265
    %v3267 = vpop.f32.mrf.mxu0
    %3268 = vdwg.mxu0
    %3269 = vmatpush.bf16.msra.mxu0 %v2884
    %3270 = vmatpush.bf16.msra.mxu0 %v2877
    %3271 = vmatpush.bf16.msra.mxu0 %v2870
    %3272 = vmatpush.bf16.msra.mxu0 %v2863
    %3273 = vmatpush.bf16.msra.mxu0 %v2856
    %3274 = vmatpush.bf16.msra.mxu0 %v2849
    %3275 = vmatpush.bf16.msra.mxu0 %v2842
    %3276 = vmatpush.bf16.msra.mxu0 %v2835
    %3277 = vmatmul.bf16.gmra.mxu0 %v1967
    %v3278 = vpop.f32.mrf.mxu0
    %v3279 = vadd.f32 %v3266, %v3278
    %v3280 = vpop.f32.mrf.mxu0
    %3281 = vdwg.mxu0
    %3282 = vmatpush.bf16.msra.mxu0 0
    %3283 = vmatpush.bf16.msra.mxu0 0
    %3284 = vmatpush.bf16.msra.mxu0 0
    %3285 = vmatpush.bf16.msra.mxu0 0
    %3286 = vmatpush.bf16.msra.mxu0 0
    %3287 = vmatpush.bf16.msra.mxu0 0
    %3288 = vmatpush.bf16.msra.mxu0 0
    %3289 = vmatpush.bf16.msra.mxu0 %v3076
    %3290 = vmatmul.bf16.gmra.mxu0 %v3064
    %v3291 = vpop.f32.mrf.mxu0
    %v3292 = vadd.f32 %v3279, %v3291
    %v3293 = vpop.f32.mrf.mxu0
    %3294 = vdwg.mxu0
    %3295 = vmatpush.bf16.msra.mxu0 %v2773
    %3296 = vmatpush.bf16.msra.mxu0 %v2766
    %3297 = vmatpush.bf16.msra.mxu0 %v2759
    %3298 = vmatpush.bf16.msra.mxu0 %v2752
    %3299 = vmatpush.bf16.msra.mxu0 %v2745
    %3300 = vmatpush.bf16.msra.mxu0 %v2738
    %3301 = vmatpush.bf16.msra.mxu0 %v2731
    %3302 = vmatpush.bf16.msra.mxu0 %v2724
    %3303 = vmatmul.bf16.gmra.mxu0 %v1965
    %v3304 = vpop.f32.mrf.mxu0
    %v3305 = vadd.f32 %v2171, %v3304
    %v3306 = vpop.f32.mrf.mxu0
    %3307 = vdwg.mxu0
    %3308 = vmatpush.bf16.msra.mxu0 %v2829
    %3309 = vmatpush.bf16.msra.mxu0 %v2822
    %3310 = vmatpush.bf16.msra.mxu0 %v2815
    %3311 = vmatpush.bf16.msra.mxu0 %v2808
    %3312 = vmatpush.bf16.msra.mxu0 %v2801
    %3313 = vmatpush.bf16.msra.mxu0 %v2794
    %3314 = vmatpush.bf16.msra.mxu0 %v2787
    %3315 = vmatpush.bf16.msra.mxu0 %v2780
    %3316 = vmatmul.bf16.gmra.mxu0 %v1966
    %v3317 = vpop.f32.mrf.mxu0
    %v3318 = vadd.f32 %v3305, %v3317
    %v3319 = vpop.f32.mrf.mxu0
    %3320 = vdwg.mxu0
    %3321 = vmatpush.bf16.msra.mxu0 %v2885
    %3322 = vmatpush.bf16.msra.mxu0 %v2878
    %3323 = vmatpush.bf16.msra.mxu0 %v2871
    %3324 = vmatpush.bf16.msra.mxu0 %v2864
    %3325 = vmatpush.bf16.msra.mxu0 %v2857
    %3326 = vmatpush.bf16.msra.mxu0 %v2850
    %3327 = vmatpush.bf16.msra.mxu0 %v2843
    %3328 = vmatpush.bf16.msra.mxu0 %v2836
    %3329 = vmatmul.bf16.gmra.mxu0 %v1967
    %v3330 = vpop.f32.mrf.mxu0
    %v3331 = vadd.f32 %v3318, %v3330
    %v3332 = vpop.f32.mrf.mxu0
    %3333 = vdwg.mxu0
    %3334 = vmatpush.bf16.msra.mxu0 0
    %3335 = vmatpush.bf16.msra.mxu0 0
    %3336 = vmatpush.bf16.msra.mxu0 0
    %3337 = vmatpush.bf16.msra.mxu0 0
    %3338 = vmatpush.bf16.msra.mxu0 0
    %3339 = vmatpush.bf16.msra.mxu0 0
    %3340 = vmatpush.bf16.msra.mxu0 0
    %3341 = vmatpush.bf16.msra.mxu0 %v3079
    %3342 = vmatmul.bf16.gmra.mxu0 %v3064
    %v3343 = vpop.f32.mrf.mxu0
    %v3344 = vadd.f32 %v3331, %v3343
    %v3345 = vpop.f32.mrf.mxu0
    %3346 = vdwg.mxu0
    %3347 = vmatpush.bf16.msra.mxu0 %v2774
    %3348 = vmatpush.bf16.msra.mxu0 %v2767
    %3349 = vmatpush.bf16.msra.mxu0 %v2760
    %3350 = vmatpush.bf16.msra.mxu0 %v2753
    %3351 = vmatpush.bf16.msra.mxu0 %v2746
    %3352 = vmatpush.bf16.msra.mxu0 %v2739
    %3353 = vmatpush.bf16.msra.mxu0 %v2732
    %3354 = vmatpush.bf16.msra.mxu0 %v2725
    %3355 = vmatmul.bf16.gmra.mxu0 %v1965
    %v3356 = vpop.f32.mrf.mxu0
    %v3357 = vadd.f32 %v2172, %v3356
    %v3358 = vpop.f32.mrf.mxu0
    %3359 = vdwg.mxu0
    %3360 = vmatpush.bf16.msra.mxu0 %v2830
    %3361 = vmatpush.bf16.msra.mxu0 %v2823
    %3362 = vmatpush.bf16.msra.mxu0 %v2816
    %3363 = vmatpush.bf16.msra.mxu0 %v2809
    %3364 = vmatpush.bf16.msra.mxu0 %v2802
    %3365 = vmatpush.bf16.msra.mxu0 %v2795
    %3366 = vmatpush.bf16.msra.mxu0 %v2788
    %3367 = vmatpush.bf16.msra.mxu0 %v2781
    %3368 = vmatmul.bf16.gmra.mxu0 %v1966
    %v3369 = vpop.f32.mrf.mxu0
    %v3370 = vadd.f32 %v3357, %v3369
    %v3371 = vpop.f32.mrf.mxu0
    %3372 = vdwg.mxu0
    %3373 = vmatpush.bf16.msra.mxu0 %v2886
    %3374 = vmatpush.bf16.msra.mxu0 %v2879
    %3375 = vmatpush.bf16.msra.mxu0 %v2872
    %3376 = vmatpush.bf16.msra.mxu0 %v2865
    %3377 = vmatpush.bf16.msra.mxu0 %v2858
    %3378 = vmatpush.bf16.msra.mxu0 %v2851
    %3379 = vmatpush.bf16.msra.mxu0 %v2844
    %3380 = vmatpush.bf16.msra.mxu0 %v2837
    %3381 = vmatmul.bf16.gmra.mxu0 %v1967
    %v3382 = vpop.f32.mrf.mxu0
    %v3383 = vadd.f32 %v3370, %v3382
    %v3384 = vpop.f32.mrf.mxu0
    %3385 = vdwg.mxu0
    %3386 = vmatpush.bf16.msra.mxu0 0
    %3387 = vmatpush.bf16.msra.mxu0 0
    %3388 = vmatpush.bf16.msra.mxu0 0
    %3389 = vmatpush.bf16.msra.mxu0 0
    %3390 = vmatpush.bf16.msra.mxu0 0
    %3391 = vmatpush.bf16.msra.mxu0 0
    %3392 = vmatpush.bf16.msra.mxu0 0
    %3393 = vmatpush.bf16.msra.mxu0 %v3082
    %3394 = vmatmul.bf16.gmra.mxu0 %v3064
    %v3395 = vpop.f32.mrf.mxu0
    %v3396 = vadd.f32 %v3383, %v3395
    %v3397 = vpop.f32.mrf.mxu0
    %3398 = vdwg.mxu0
    %3399 = vmatpush.bf16.msra.mxu0 %v2775
    %3400 = vmatpush.bf16.msra.mxu0 %v2768
    %3401 = vmatpush.bf16.msra.mxu0 %v2761
    %3402 = vmatpush.bf16.msra.mxu0 %v2754
    %3403 = vmatpush.bf16.msra.mxu0 %v2747
    %3404 = vmatpush.bf16.msra.mxu0 %v2740
    %3405 = vmatpush.bf16.msra.mxu0 %v2733
    %3406 = vmatpush.bf16.msra.mxu0 %v2726
    %3407 = vmatmul.bf16.gmra.mxu0 %v1965
    %v3408 = vpop.f32.mrf.mxu0
    %v3409 = vadd.f32 %v2173, %v3408
    %v3410 = vpop.f32.mrf.mxu0
    %3411 = vdwg.mxu0
    %3412 = vmatpush.bf16.msra.mxu0 %v2831
    %3413 = vmatpush.bf16.msra.mxu0 %v2824
    %3414 = vmatpush.bf16.msra.mxu0 %v2817
    %3415 = vmatpush.bf16.msra.mxu0 %v2810
    %3416 = vmatpush.bf16.msra.mxu0 %v2803
    %3417 = vmatpush.bf16.msra.mxu0 %v2796
    %3418 = vmatpush.bf16.msra.mxu0 %v2789
    %3419 = vmatpush.bf16.msra.mxu0 %v2782
    %3420 = vmatmul.bf16.gmra.mxu0 %v1966
    %v3421 = vpop.f32.mrf.mxu0
    %v3422 = vadd.f32 %v3409, %v3421
    %v3423 = vpop.f32.mrf.mxu0
    %3424 = vdwg.mxu0
    %3425 = vmatpush.bf16.msra.mxu0 %v2887
    %3426 = vmatpush.bf16.msra.mxu0 %v2880
    %3427 = vmatpush.bf16.msra.mxu0 %v2873
    %3428 = vmatpush.bf16.msra.mxu0 %v2866
    %3429 = vmatpush.bf16.msra.mxu0 %v2859
    %3430 = vmatpush.bf16.msra.mxu0 %v2852
    %3431 = vmatpush.bf16.msra.mxu0 %v2845
    %3432 = vmatpush.bf16.msra.mxu0 %v2838
    %3433 = vmatmul.bf16.gmra.mxu0 %v1967
    %v3434 = vpop.f32.mrf.mxu0
    %v3435 = vadd.f32 %v3422, %v3434
    %v3436 = vpop.f32.mrf.mxu0
    %3437 = vdwg.mxu0
    %3438 = vmatpush.bf16.msra.mxu0 0
    %3439 = vmatpush.bf16.msra.mxu0 0
    %3440 = vmatpush.bf16.msra.mxu0 0
    %3441 = vmatpush.bf16.msra.mxu0 0
    %3442 = vmatpush.bf16.msra.mxu0 0
    %3443 = vmatpush.bf16.msra.mxu0 0
    %3444 = vmatpush.bf16.msra.mxu0 0
    %3445 = vmatpush.bf16.msra.mxu0 %v3085
    %3446 = vmatmul.bf16.gmra.mxu0 %v3064
    %v3447 = vpop.f32.mrf.mxu0
    %v3448 = vadd.f32 %v3435, %v3447
    %v3449 = vpop.f32.mrf.mxu0
    %3450 = vdwg.mxu0
    %v3451 = vxor.u32 %v3136, 2147483648
    %v3452 = vxor.u32 %v3188, 2147483648
    %v3453 = vxor.u32 %v3240, 2147483648
    %v3454 = vxor.u32 %v3292, 2147483648
    %v3455 = vxor.u32 %v3344, 2147483648
    %v3456 = vxor.u32 %v3396, 2147483648
    %v3457 = vxor.u32 %v3448, 2147483648
    %v3458 = vmul.f32 %v3451, 1.442695
    %v3459 = vpow.pop %v3458
    %v3460 = vmul.f32 %v3452, 1.442695
    %v3461 = vpow.pop %v3460
    %v3462 = vmul.f32 %v3453, 1.442695
    %v3463 = vpow.pop %v3462
    %v3464 = vmul.f32 %v3454, 1.442695
    %v3465 = vpow.pop %v3464
    %v3466 = vmul.f32 %v3455, 1.442695
    %v3467 = vpow.pop %v3466
    %v3468 = vmul.f32 %v3456, 1.442695
    %v3469 = vpow.pop %v3468
    %v3470 = vmul.f32 %v3457, 1.442695
    %v3471 = vpow.pop %v3470
    %v3472 = vadd.f32 %v3459, 1.0
    %v3473 = vadd.f32 %v3461, 1.0
    %v3474 = vadd.f32 %v3463, 1.0
    %v3475 = vadd.f32 %v3465, 1.0
    %v3476 = vadd.f32 %v3467, 1.0
    %v3477 = vadd.f32 %v3469, 1.0
    %v3478 = vadd.f32 %v3471, 1.0
    %v3479 = vrcp.pop %v3472
    %v3480 = vmul.f32 %v3472, %v3479
    %v3481 = vsub.f32 1.0, %v3480
    %v3482 = vmul.f32 %v3479, %v3481
    %v3483 = vadd.f32 %v3479, %v3482
    %vm3484 = vweird.f32 %v3472
    %vm3485 = vweird.f32 %v3479
    %vm3486 = vmor %vm3484, %vm3485
    %v3487 = vsel %vm3486, %v3479, %v3483
    %v3488 = vand.u32 2147483647, %v3472
    %vm3489 = vcmp.eq.f32.partialorder %v3488, 8.507059e+37
    %v3490 = vand.u32 %v3472, 2147483648
    %v3491 = vor.u32 1.1754944e-38, %v3490
    %v3492 = vsel %vm3489, %v3491, %v3487
    %v3493 = vmul.f32 1.0, %v3492
    %v3494 = vrcp.pop %v3473
    %v3495 = vmul.f32 %v3473, %v3494
    %v3496 = vsub.f32 1.0, %v3495
    %v3497 = vmul.f32 %v3494, %v3496
    %v3498 = vadd.f32 %v3494, %v3497
    %vm3499 = vweird.f32 %v3473
    %vm3500 = vweird.f32 %v3494
    %vm3501 = vmor %vm3499, %vm3500
    %v3502 = vsel %vm3501, %v3494, %v3498
    %v3503 = vand.u32 2147483647, %v3473
    %vm3504 = vcmp.eq.f32.partialorder %v3503, 8.507059e+37
    %v3505 = vand.u32 %v3473, 2147483648
    %v3506 = vor.u32 1.1754944e-38, %v3505
    %v3507 = vsel %vm3504, %v3506, %v3502
    %v3508 = vmul.f32 1.0, %v3507
    %v3509 = vrcp.pop %v3474
    %v3510 = vmul.f32 %v3474, %v3509
    %v3511 = vsub.f32 1.0, %v3510
    %v3512 = vmul.f32 %v3509, %v3511
    %v3513 = vadd.f32 %v3509, %v3512
    %vm3514 = vweird.f32 %v3474
    %vm3515 = vweird.f32 %v3509
    %vm3516 = vmor %vm3514, %vm3515
    %v3517 = vsel %vm3516, %v3509, %v3513
    %v3518 = vand.u32 2147483647, %v3474
    %vm3519 = vcmp.eq.f32.partialorder %v3518, 8.507059e+37
    %v3520 = vand.u32 %v3474, 2147483648
    %v3521 = vor.u32 1.1754944e-38, %v3520
    %v3522 = vsel %vm3519, %v3521, %v3517
    %v3523 = vmul.f32 1.0, %v3522
    %v3524 = vrcp.pop %v3475
    %v3525 = vmul.f32 %v3475, %v3524
    %v3526 = vsub.f32 1.0, %v3525
    %v3527 = vmul.f32 %v3524, %v3526
    %v3528 = vadd.f32 %v3524, %v3527
    %vm3529 = vweird.f32 %v3475
    %vm3530 = vweird.f32 %v3524
    %vm3531 = vmor %vm3529, %vm3530
    %v3532 = vsel %vm3531, %v3524, %v3528
    %v3533 = vand.u32 2147483647, %v3475
    %vm3534 = vcmp.eq.f32.partialorder %v3533, 8.507059e+37
    %v3535 = vand.u32 %v3475, 2147483648
    %v3536 = vor.u32 1.1754944e-38, %v3535
    %v3537 = vsel %vm3534, %v3536, %v3532
    %v3538 = vmul.f32 1.0, %v3537
    %v3539 = vrcp.pop %v3476
    %v3540 = vmul.f32 %v3476, %v3539
    %v3541 = vsub.f32 1.0, %v3540
    %v3542 = vmul.f32 %v3539, %v3541
    %v3543 = vadd.f32 %v3539, %v3542
    %vm3544 = vweird.f32 %v3476
    %vm3545 = vweird.f32 %v3539
    %vm3546 = vmor %vm3544, %vm3545
    %v3547 = vsel %vm3546, %v3539, %v3543
    %v3548 = vand.u32 2147483647, %v3476
    %vm3549 = vcmp.eq.f32.partialorder %v3548, 8.507059e+37
    %v3550 = vand.u32 %v3476, 2147483648
    %v3551 = vor.u32 1.1754944e-38, %v3550
    %v3552 = vsel %vm3549, %v3551, %v3547
    %v3553 = vmul.f32 1.0, %v3552
    %v3554 = vrcp.pop %v3477
    %v3555 = vmul.f32 %v3477, %v3554
    %v3556 = vsub.f32 1.0, %v3555
    %v3557 = vmul.f32 %v3554, %v3556
    %v3558 = vadd.f32 %v3554, %v3557
    %vm3559 = vweird.f32 %v3477
    %vm3560 = vweird.f32 %v3554
    %vm3561 = vmor %vm3559, %vm3560
    %v3562 = vsel %vm3561, %v3554, %v3558
    %v3563 = vand.u32 2147483647, %v3477
    %vm3564 = vcmp.eq.f32.partialorder %v3563, 8.507059e+37
    %v3565 = vand.u32 %v3477, 2147483648
    %v3566 = vor.u32 1.1754944e-38, %v3565
    %v3567 = vsel %vm3564, %v3566, %v3562
    %v3568 = vmul.f32 1.0, %v3567
    %v3569 = vrcp.pop %v3478
    %v3570 = vmul.f32 %v3478, %v3569
    %v3571 = vsub.f32 1.0, %v3570
    %v3572 = vmul.f32 %v3569, %v3571
    %v3573 = vadd.f32 %v3569, %v3572
    %vm3574 = vweird.f32 %v3478
    %vm3575 = vweird.f32 %v3569
    %vm3576 = vmor %vm3574, %vm3575
    %v3577 = vsel %vm3576, %v3569, %v3573
    %v3578 = vand.u32 2147483647, %v3478
    %vm3579 = vcmp.eq.f32.partialorder %v3578, 8.507059e+37
    %v3580 = vand.u32 %v3478, 2147483648
    %v3581 = vor.u32 1.1754944e-38, %v3580
    %v3582 = vsel %vm3579, %v3581, %v3577
    %v3583 = vmul.f32 1.0, %v3582
    %3584 = vst [vmem:[#allocation2] sm:$0xff] %v3493
    %3585 = vst [vmem:[#allocation2 + $0x8] sm:$0xff] %v3508
    %3586 = vst [vmem:[#allocation2 + $0x10] sm:$0xff] %v3523
    %3587 = vst [vmem:[#allocation2 + $0x18] sm:$0xff] %v3538
    %3588 = vst [vmem:[#allocation2 + $0x20] sm:$0xff] %v3553
    %3589 = vst [vmem:[#allocation2 + $0x28] sm:$0xff] %v3568
    %3590 = vst.msk [vmem:[#allocation2 + $0x30] sm:$0xff] %vm1234, %v3583
    // Predicated region
    $region38: #{tpu_custom_call.1} parent=1 // pred_check
      _
    $region39: #{tpu_custom_call.1} parent=1 // pred_check_branch
      %3592 = sbr.rel (0) target = $region41
    $region40: #{tpu_custom_call.1} parent=1 // pred_region
      %3594 = vsyncadd [#allocation3], 0
      %s3596 = sshll.u32 [#allocation2], 4
      %s3597 = int_to_ptr.vmem [resolvable:$true] %s3596
      %s3598 = sshll.u32 %s9, 4
      %s3599 = int_to_ptr.hbm [resolvable:$true] %s3598
      %3601 = dma.vmem_to_hbm [thread:$0]  %s3597, 896, %s3599, [#allocation3]
    $region41: #{tpu_custom_call.1} parent=1 // pred_fallthru
      _
    // Predicated region
    $region42: #{tpu_custom_call.1} parent=1 // pred_check
      _
    $region43: #{tpu_custom_call.1} parent=1 // pred_check_branch
      %3603 = sbr.rel (0) target = $region45
    $region44: #{tpu_custom_call.1} parent=1 // pred_region
      %3605 = dma.done [#allocation3], 896
    $region45: #{tpu_custom_call.1} parent=1 // pred_fallthru
      _
    %3606 = vsyncpa [#allocation3], 1

</llo_original>
